<compile_context>
chip_gen: v7x
topology: tpu7x:2x2x1
jax: 0.10.0
libtpu: 0.0.40
codegen_flags: <defaults>
</compile_context>

<pallas_src>
import jax
import jax.numpy as jnp
from jax.experimental import pallas as pl
from jax.experimental.pallas import tpu as pltpu


# -----------------------------------------------------------------------------
# Kernels
# -----------------------------------------------------------------------------
def make_resident_kernel(num_layers):
    """Resident-W path: one grid step per batch tile; layer loop fused in-kernel.

    x_ref : [TB, Dp]        input batch tile
    w_ref : [L, Dp, 2Dp]    full weight stack (bf16), resident in VMEM
    b_ref : [L, 2Dp]        full bias stack (f32), resident in VMEM
    o_ref : [TB, Dp]        output tile
    """

    def kernel(x_ref, w_ref, b_ref, o_ref):
        dp = x_ref.shape[-1]
        h0 = x_ref[...].astype(jnp.float32)

        def body(l, h):
            # bf16 operands on the MXU, f32 accumulation.
            proj = jnp.dot(h.astype(w_ref.dtype), w_ref[l],
                           preferred_element_type=jnp.float32)
            proj = proj + b_ref[pl.ds(l, 1), :]          # [1, 2Dp] broadcast
            nonlinear = jnp.maximum(proj[:, :dp], 0.0)   # ReLU (VPU)
            gate = jax.nn.sigmoid(proj[:, dp:])          # EUP slot
            # gate*h + (1-gate)*nonlinear == nonlinear + gate*(h - nonlinear)
            return nonlinear + gate * (h - nonlinear)

        h = jax.lax.fori_loop(0, num_layers, body, h0, unroll=True)
        o_ref[...] = h.astype(o_ref.dtype)

    return kernel


def highway_streamed_kernel(x_ref, w_ref, b_ref, o_ref, h_ref, acc_ref):
    """Streamed, K-tiled path: one grid step == (batch tile, layer, K chunk).

    x_ref  : [TB, Dp]            input tile (read only at layer 0, k 0)
    w_ref  : [blk_k, 2Dp]        this (layer, k) weight chunk (bf16), streamed
    b_ref  : [L, 2Dp]            bias stack (f32), resident
    o_ref  : [TB, Dp]            output tile (written at last layer, last k)
    h_ref  : [n_k, TB, blk_k]    f32 carry of the activation, split by K chunk
    acc_ref: [TB, 2Dp]           f32 proj accumulator
    """
    layer = pl.program_id(1)
    kidx = pl.program_id(2)
    n_layers = pl.num_programs(1)
    n_k = h_ref.shape[0]
    blk_k = h_ref.shape[-1]
    dp = x_ref.shape[-1]

    @pl.when(jnp.logical_and(layer == 0, kidx == 0))
    def _():
        xv = x_ref[...].astype(jnp.float32)
        for j in range(n_k):
            h_ref[j] = xv[:, j * blk_k:(j + 1) * blk_k]

    @pl.when(kidx == 0)
    def _():
        acc_ref[...] = jnp.zeros_like(acc_ref)

    acc_ref[...] += jnp.dot(h_ref[kidx].astype(w_ref.dtype), w_ref[...],
                            preferred_element_type=jnp.float32)

    @pl.when(kidx == n_k - 1)
    def _():
        bias = b_ref[pl.ds(layer, 1), :]                  # [1, 2Dp]
        is_last_layer = layer == n_layers - 1
        # Epilogue in lane-chunks: bounds live f32 temps (vreg pressure) at
        # large tb * D instead of materializing full proj/nonlinear/gate.
        for j in range(n_k):
            lo = j * blk_k
            nl = jnp.maximum(acc_ref[:, lo:lo + blk_k]
                             + bias[:, lo:lo + blk_k], 0.0)
            gt = jax.nn.sigmoid(acc_ref[:, dp + lo:dp + lo + blk_k]
                                + bias[:, dp + lo:dp + lo + blk_k])
            hj = h_ref[j]
            new_hj = nl + gt * (hj - nl)

            @pl.when(jnp.logical_not(is_last_layer))
            def _(j=j, new_hj=new_hj):
                h_ref[j] = new_hj                          # carry to next layer

            @pl.when(is_last_layer)
            def _(lo=lo, new_hj=new_hj):
                o_ref[:, lo:lo + blk_k] = new_hj.astype(o_ref.dtype)


# -----------------------------------------------------------------------------
# Wrapper
# -----------------------------------------------------------------------------
def _round_up(n, m):
    return ((n + m - 1) // m) * m


def _pick_batch_tile(B):
    """Large MXU-friendly M tile that divides B; never split a small batch."""
    for cand in (512, 384, 256, 128, 64, 32, 16, 8):
        if B % cand == 0:
            return cand
    return B  # ragged small batch: one full-batch tile (full-dim block is OK)


def _vmem_budget_bytes():
    """Chip-aware scoped-VMEM budget (per TensorCore), with headroom."""
    try:
        phys = int(pltpu.get_tpu_info().vmem_capacity_bytes)
    except Exception:
        phys = 64 * 1024 * 1024  # safe for all generations (v7x per-TC VMEM)
    return max(32 * 1024 * 1024, min(int(phys * 0.85), 112 * 1024 * 1024))


def highway_pallas(x, w_stack, b_stack, *, block_batch=None, block_k=None,
                   weight_dtype=jnp.bfloat16, force_streamed=False):
    """x: [B, D]; w_stack: [L, D, 2D] (pre-transposed); b_stack: [L, 2D]."""
    B, D = x.shape
    L = w_stack.shape[0]
    assert w_stack.shape == (L, D, 2 * D)
    assert b_stack.shape == (L, 2 * D)

    # --- pad D to a lane-aligned multiple of 128 (padded lanes stay zero) ----
    Dp = _round_up(max(D, 128), 128)
    w = w_stack.astype(weight_dtype)
    b = b_stack.astype(jnp.float32)
    if Dp != D:
        x_in = jnp.pad(x, ((0, 0), (0, Dp - D)))
        w_in = jnp.zeros((L, Dp, 2 * Dp), weight_dtype)
        w_in = w_in.at[:, :D, :D].set(w[:, :, :D])
        w_in = w_in.at[:, :D, Dp:Dp + D].set(w[:, :, D:])
        b_in = jnp.zeros((L, 2 * Dp), jnp.float32)
        b_in = b_in.at[:, :D].set(b[:, :D])
        b_in = b_in.at[:, Dp:Dp + D].set(b[:, D:])
    else:
        x_in, w_in, b_in = x, w, b

    # --- tiling / VMEM policy -------------------------------------------------
    tb = block_batch if block_batch is not None else _pick_batch_tile(B)
    assert B % tb == 0, "batch tile must divide the batch"
    n_tiles = B // tb

    isz = jnp.dtype(x.dtype).itemsize
    wsz = jnp.dtype(weight_dtype).itemsize
    budget = _vmem_budget_bytes()

    w_bytes = L * Dp * 2 * Dp * wsz
    io_bytes = 2 * tb * Dp * isz * 2          # x + out tiles, double-buffered
    bias_bytes = L * 2 * Dp * 4
    temp_bytes = 6 * tb * 2 * Dp * 4          # slack for proj-sized f32 temps
    resident_fits = (2 * w_bytes + io_bytes + bias_bytes + temp_bytes) <= budget

    compiler_kwargs = dict(vmem_limit_bytes=int(budget))

    if resident_fits and not force_streamed:
        # ---- resident-W, fused-layer path: grid = (batch tiles,) ------------
        out_p = pl.pallas_call(
            make_resident_kernel(L),
            out_shape=jax.ShapeDtypeStruct((B, Dp), x.dtype),
            grid_spec=pltpu.PrefetchScalarGridSpec(
                num_scalar_prefetch=0,
                grid=(n_tiles,),
                in_specs=[
                    pl.BlockSpec((tb, Dp), lambda bb: (bb, 0)),          # x tile
                    pl.BlockSpec((L, Dp, 2 * Dp), lambda bb: (0, 0, 0)),  # W (resident)
                    pl.BlockSpec((L, 2 * Dp), lambda bb: (0, 0)),        # biases
                ],
                out_specs=pl.BlockSpec((tb, Dp), lambda bb: (bb, 0)),
            ),
            compiler_params=pltpu.CompilerParams(
                # batch tiles are independent -> megacore-shardable on v7x.
                dimension_semantics=("parallel",),
                **compiler_kwargs,
            ),
        )(x_in, w_in, b_in)
    else:
        # ---- streamed, K-tiled path: grid = (batch tiles, layers, K chunks) -
        if block_k is not None:
            blk_k = block_k
        else:
            blk_k = 128
            for cand in (512, 256, 128):
                if Dp % cand == 0:
                    blk_k = cand
                    break
        assert Dp % blk_k == 0 and blk_k % 128 == 0
        n_k = Dp // blk_k

        out_p = pl.pallas_call(
            highway_streamed_kernel,
            out_shape=jax.ShapeDtypeStruct((B, Dp), x.dtype),
            grid_spec=pltpu.PrefetchScalarGridSpec(
                num_scalar_prefetch=0,
                grid=(n_tiles, L, n_k),
                in_specs=[
                    pl.BlockSpec((tb, Dp), lambda bb, l, k: (bb, 0)),     # x tile
                    pl.BlockSpec((None, blk_k, 2 * Dp),
                                 lambda bb, l, k: (l, k, 0)),             # W chunk
                    pl.BlockSpec((L, 2 * Dp), lambda bb, l, k: (0, 0)),   # biases
                ],
                out_specs=pl.BlockSpec((tb, Dp), lambda bb, l, k: (bb, 0)),
                scratch_shapes=[
                    pltpu.VMEM((n_k, tb, blk_k), jnp.float32),   # h carry
                    pltpu.VMEM((tb, 2 * Dp), jnp.float32),       # proj accumulator
                ],
            ),
            compiler_params=pltpu.CompilerParams(
                dimension_semantics=("parallel", "arbitrary", "arbitrary"),
                **compiler_kwargs,
            ),
        )(x_in, w_in, b_in)

    return out_p if Dp == D else out_p[:, :D]


# -----------------------------------------------------------------------------
# Pure-JAX reference (same bf16-operand / f32-accumulate matmul)
# -----------------------------------------------------------------------------
def highway_reference(x, w_stack, b_stack, weight_dtype=jnp.bfloat16):
    L = w_stack.shape[0]
    D = x.shape[-1]
    h = x.astype(jnp.float32)
    w = w_stack.astype(weight_dtype)
    b = b_stack.astype(jnp.float32)
    for l in range(L):
        proj = jnp.dot(h.astype(weight_dtype), w[l],
                       preferred_element_type=jnp.float32) + b[l][None, :]
        nonlinear = jax.nn.relu(proj[:, :D])
        gate = jax.nn.sigmoid(proj[:, D:])
        h = gate * h + (1.0 - gate) * nonlinear
    return h.astype(x.dtype)


# -----------------------------------------------------------------------------
# Demo / correctness checks
# -----------------------------------------------------------------------------
if __name__ == "__main__":
    key = jax.random.PRNGKey(0)

    def make_params(k, B, D, L):
        kx, kw, kb = jax.random.split(k, 3)
        x = jax.random.normal(kx, (B, D), dtype=jnp.float32)
        bound = 1.0 / (D ** 0.5)
        # nn.Linear(D, 2D) weight is [2D, D]; stored here pre-transposed [D, 2D].
        w = jax.random.uniform(kw, (L, D, 2 * D), jnp.float32, -bound, bound)
        b_lin = jax.random.uniform(kb, (L, D), jnp.float32, -bound, bound)
        b_gate = jnp.ones((L, D), jnp.float32)       # gate bias init = 1
        b = jnp.concatenate([b_lin, b_gate], axis=-1)
        return x, w, b

    def check(out, ref, tag):
        assert out.shape == ref.shape and out.dtype == ref.dtype, tag
        err = float(jnp.max(jnp.abs(out - ref)))
        assert jnp.allclose(out, ref, atol=2e-3, rtol=2e-3), (tag, err)

    # 1) Default resident-W fused-layer path; one full 256-row MXU batch tile.
    x1, w1, b1 = make_params(jax.random.fold_in(key, 0), 256, 128, 3)
    out1 = jax.block_until_ready(highway_pallas(x1, w1, b1))
    check(out1, highway_reference(x1, w1, b1), "resident")

    # 2) Streamed K-tiled path (forced): grid = (2 batch tiles, 2 layers, 2 K chunks).
    x2, w2, b2 = make_params(jax.random.fold_in(key, 1), 128, 256, 2)
    out2 = jax.block_until_ready(
        highway_pallas(x2, w2, b2, block_batch=64, block_k=128,
                       force_streamed=True))
    check(out2, highway_reference(x2, w2, b2), "streamed")

    # 3) Lane-unaligned D exercises the pad-to-128 wrapper path.
    x3, w3, b3 = make_params(jax.random.fold_in(key, 2), 32, 96, 2)
    out3 = jax.block_until_ready(highway_pallas(x3, w3, b3))
    check(out3, highway_reference(x3, w3, b3), "padded")

    print("KERNEL_OK")
</pallas_src>

<mosaic_0001>
module attributes {stable_mosaic.version = 11 : i64} {
  func.func @kernel(%arg0: i32, %arg1: memref<256x128xf32, #tpu.memory_space<vmem>>, %arg2: memref<3x128x256xbf16, #tpu.memory_space<vmem>>, %arg3: memref<3x256xf32, #tpu.memory_space<vmem>>, %arg4: memref<256x128xf32, #tpu.memory_space<vmem>>) attributes {dimension_semantics = [#tpu.dimension_semantics<parallel>], iteration_bounds = array<i64: 1>, scalar_prefetch = 0 : i64, scratch_operands = 0 : i64, tpu.core_type = #tpu.core_type<tc>, window_params = [{transform_indices = @transform_0, window_bounds = array<i64: 256, 128>}, {pipeline_mode = #tpu.pipeline_mode<synchronous>, transform_indices = @transform_1, window_bounds = array<i64: 3, 128, 256>}, {pipeline_mode = #tpu.pipeline_mode<synchronous>, transform_indices = @transform_2, window_bounds = array<i64: 3, 256>}, {transform_indices = @transform_3, window_bounds = array<i64: 256, 128>}]} {
    %c0 = arith.constant 0 : index
    %c0_0 = arith.constant 0 : index
    %0 = vector.load %arg1[%c0, %c0_0] : memref<256x128xf32, #tpu.memory_space<vmem>>, vector<256x128xf32>
    %c0_i32 = arith.constant 0 : i32
    %1 = arith.truncf %0 : vector<256x128xf32> to vector<256x128xbf16>
    %2 = arith.index_cast %c0_i32 : i32 to index
    %c0_1 = arith.constant 0 : index
    %c0_2 = arith.constant 0 : index
    %3 = vector.load %arg2[%2, %c0_1, %c0_2] : memref<3x128x256xbf16, #tpu.memory_space<vmem>>, vector<1x128x256xbf16>
    %4 = vector.shape_cast %3 : vector<1x128x256xbf16> to vector<128x256xbf16>
    %cst = arith.constant dense<0.000000e+00> : vector<256x256xf32>
    %5 = tpu.matmul %1, %4, %cst {dimension_numbers = #tpu.dot_dimension_numbers<[1], [0], [0], [1], [0, 0, 1, 1], [], []>} : vector<256x128xbf16>, vector<128x256xbf16>, vector<256x256xf32> -> vector<256x256xf32>
    %6 = arith.index_cast %c0_i32 : i32 to index
    %c0_3 = arith.constant 0 : index
    %7 = vector.load %arg3[%6, %c0_3] : memref<3x256xf32, #tpu.memory_space<vmem>>, vector<1x256xf32>
    %8 = vector.broadcast %7 : vector<1x256xf32> to vector<256x256xf32>
    %9 = arith.addf %5, %8 : vector<256x256xf32>
    %10 = vector.extract_strided_slice %9 {offsets = [0, 0], sizes = [256, 128], strides = [1, 1]} : vector<256x256xf32> to vector<256x128xf32>
    %cst_4 = arith.constant 0.000000e+00 : f32
    %11 = vector.broadcast %cst_4 : f32 to vector<256x128xf32>
    %12 = arith.maximumf %10, %11 : vector<256x128xf32>
    %13 = vector.extract_strided_slice %9 {offsets = [0, 128], sizes = [256, 128], strides = [1, 1]} : vector<256x256xf32> to vector<256x128xf32>
    %14 = arith.negf %13 : vector<256x128xf32>
    %15 = math.exp %14 : vector<256x128xf32>
    %cst_5 = arith.constant 1.000000e+00 : f32
    %16 = vector.broadcast %cst_5 : f32 to vector<256x128xf32>
    %17 = arith.addf %16, %15 : vector<256x128xf32>
    %18 = arith.divf %16, %17 : vector<256x128xf32>
    %19 = arith.subf %0, %12 : vector<256x128xf32>
    %20 = arith.mulf %18, %19 : vector<256x128xf32>
    %21 = arith.addf %12, %20 : vector<256x128xf32>
    %c1_i32 = arith.constant 1 : i32
    %22 = arith.truncf %21 : vector<256x128xf32> to vector<256x128xbf16>
    %23 = arith.index_cast %c1_i32 : i32 to index
    %c0_6 = arith.constant 0 : index
    %c0_7 = arith.constant 0 : index
    %24 = vector.load %arg2[%23, %c0_6, %c0_7] : memref<3x128x256xbf16, #tpu.memory_space<vmem>>, vector<1x128x256xbf16>
    %25 = vector.shape_cast %24 : vector<1x128x256xbf16> to vector<128x256xbf16>
    %cst_8 = arith.constant dense<0.000000e+00> : vector<256x256xf32>
    %26 = tpu.matmul %22, %25, %cst_8 {dimension_numbers = #tpu.dot_dimension_numbers<[1], [0], [0], [1], [0, 0, 1, 1], [], []>} : vector<256x128xbf16>, vector<128x256xbf16>, vector<256x256xf32> -> vector<256x256xf32>
    %27 = arith.index_cast %c1_i32 : i32 to index
    %c0_9 = arith.constant 0 : index
    %28 = vector.load %arg3[%27, %c0_9] : memref<3x256xf32, #tpu.memory_space<vmem>>, vector<1x256xf32>
    %29 = vector.broadcast %28 : vector<1x256xf32> to vector<256x256xf32>
    %30 = arith.addf %26, %29 : vector<256x256xf32>
    %31 = vector.extract_strided_slice %30 {offsets = [0, 0], sizes = [256, 128], strides = [1, 1]} : vector<256x256xf32> to vector<256x128xf32>
    %cst_10 = arith.constant 0.000000e+00 : f32
    %32 = vector.broadcast %cst_10 : f32 to vector<256x128xf32>
    %33 = arith.maximumf %31, %32 : vector<256x128xf32>
    %34 = vector.extract_strided_slice %30 {offsets = [0, 128], sizes = [256, 128], strides = [1, 1]} : vector<256x256xf32> to vector<256x128xf32>
    %35 = arith.negf %34 : vector<256x128xf32>
    %36 = math.exp %35 : vector<256x128xf32>
    %cst_11 = arith.constant 1.000000e+00 : f32
    %37 = vector.broadcast %cst_11 : f32 to vector<256x128xf32>
    %38 = arith.addf %37, %36 : vector<256x128xf32>
    %39 = arith.divf %37, %38 : vector<256x128xf32>
    %40 = arith.subf %21, %33 : vector<256x128xf32>
    %41 = arith.mulf %39, %40 : vector<256x128xf32>
    %42 = arith.addf %33, %41 : vector<256x128xf32>
    %c2_i32 = arith.constant 2 : i32
    %43 = arith.truncf %42 : vector<256x128xf32> to vector<256x128xbf16>
    %44 = arith.index_cast %c2_i32 : i32 to index
    %c0_12 = arith.constant 0 : index
    %c0_13 = arith.constant 0 : index
    %45 = vector.load %arg2[%44, %c0_12, %c0_13] : memref<3x128x256xbf16, #tpu.memory_space<vmem>>, vector<1x128x256xbf16>
    %46 = vector.shape_cast %45 : vector<1x128x256xbf16> to vector<128x256xbf16>
    %cst_14 = arith.constant dense<0.000000e+00> : vector<256x256xf32>
    %47 = tpu.matmul %43, %46, %cst_14 {dimension_numbers = #tpu.dot_dimension_numbers<[1], [0], [0], [1], [0, 0, 1, 1], [], []>} : vector<256x128xbf16>, vector<128x256xbf16>, vector<256x256xf32> -> vector<256x256xf32>
    %48 = arith.index_cast %c2_i32 : i32 to index
    %c0_15 = arith.constant 0 : index
    %49 = vector.load %arg3[%48, %c0_15] : memref<3x256xf32, #tpu.memory_space<vmem>>, vector<1x256xf32>
    %50 = vector.broadcast %49 : vector<1x256xf32> to vector<256x256xf32>
    %51 = arith.addf %47, %50 : vector<256x256xf32>
    %52 = vector.extract_strided_slice %51 {offsets = [0, 0], sizes = [256, 128], strides = [1, 1]} : vector<256x256xf32> to vector<256x128xf32>
    %cst_16 = arith.constant 0.000000e+00 : f32
    %53 = vector.broadcast %cst_16 : f32 to vector<256x128xf32>
    %54 = arith.maximumf %52, %53 : vector<256x128xf32>
    %55 = vector.extract_strided_slice %51 {offsets = [0, 128], sizes = [256, 128], strides = [1, 1]} : vector<256x256xf32> to vector<256x128xf32>
    %56 = arith.negf %55 : vector<256x128xf32>
    %57 = math.exp %56 : vector<256x128xf32>
    %cst_17 = arith.constant 1.000000e+00 : f32
    %58 = vector.broadcast %cst_17 : f32 to vector<256x128xf32>
    %59 = arith.addf %58, %57 : vector<256x128xf32>
    %60 = arith.divf %58, %59 : vector<256x128xf32>
    %61 = arith.subf %42, %54 : vector<256x128xf32>
    %62 = arith.mulf %60, %61 : vector<256x128xf32>
    %63 = arith.addf %54, %62 : vector<256x128xf32>
    %c3_i32 = arith.constant 3 : i32
    %c0_18 = arith.constant 0 : index
    %c0_19 = arith.constant 0 : index
    %64 = vector.load %arg4[%c0_18, %c0_19] : memref<256x128xf32, #tpu.memory_space<vmem>>, vector<256x128xf32>
    tpu.vector_store %arg4[%c0_18, %c0_19], %63 {strides = array<i32>} : memref<256x128xf32, #tpu.memory_space<vmem>>, vector<256x128xf32>,
    return
  }
  func.func @transform_0(%arg0: i32) -> (i32, i32) {
    %c0_i32 = arith.constant 0 : i32
    %c0_i32_0 = arith.constant 0 : i32
    return %arg0, %c0_i32 : i32, i32
  }
  func.func @transform_1(%arg0: i32) -> (i32, i32, i32) {
    %c0_i32 = arith.constant 0 : i32
    %c0_i32_0 = arith.constant 0 : i32
    %c0_i32_1 = arith.constant 0 : i32
    %c0_i32_2 = arith.constant 0 : i32
    return %c0_i32, %c0_i32_0, %c0_i32_1 : i32, i32, i32
  }
  func.func @transform_2(%arg0: i32) -> (i32, i32) {
    %c0_i32 = arith.constant 0 : i32
    %c0_i32_0 = arith.constant 0 : i32
    %c0_i32_1 = arith.constant 0 : i32
    return %c0_i32, %c0_i32_0 : i32, i32
  }
  func.func @transform_3(%arg0: i32) -> (i32, i32) {
    %c0_i32 = arith.constant 0 : i32
    %c0_i32_0 = arith.constant 0 : i32
    return %arg0, %c0_i32 : i32, i32
  }
}

</mosaic_0001>

<llo_original>
// kernel: tpu_custom_call.1
$region0: #{tpu_custom_call.1}
  #allocation0 [shape = 'u32[]', space=smem, size = 0x4, offset = 0x4, fixed_abs, tag = 'smem constant byte address 0x4 - core index']
  #allocation1 [shape = 'u32[144,128]{1,0:T(1,128)}', space=vmem, size = 0x12000, scoped, tag = 'internal scratch']
  %s0 = inlined_call_operand.hbm [shape: f32[256,128], index: 0, kind: input, shape index: {}]
  %s1 = inlined_call_operand.hbm [shape: bf16[3,128,256], index: 1, kind: input, shape index: {}]
  %s2 = inlined_call_operand.hbm [shape: f32[3,256], index: 2, kind: input, shape index: {}]
  %s3 = inlined_call_operand.hbm [shape: f32[256,128], index: 3, kind: output, shape index: {}]
  %s4 = sld [smem:[#allocation0]]
  $region34: #{tpu_custom_call.1} parent=0
    _
  %s6 = ssub.s32 1, %s4
  %s7 = scalar_select 0, %s6, %s4
  $region1: #{tpu_custom_call.1} parent=0
    #allocation2 [shape = 'u8[131072]{0}', space=vmem, size = 0x20000, scoped, tag = 'input window, operand 0, single buffered']
    #allocation3 [shape = 's32[1]{0}', space=sflag, size = 0x4, scoped, tag = 'scoped memory for tpu_custom_call.1']
    #allocation4 [shape = 's32[1]{0}', space=sflag, size = 0x4, scoped, tag = 'scoped memory for tpu_custom_call.1']
    #allocation5 [shape = 'u8[196608]{0}', space=vmem, size = 0x30000, scoped, tag = 'input window, operand 1, single buffered']
    #allocation6 [shape = 's32[1]{0}', space=sflag, size = 0x4, scoped, tag = 'scoped memory for tpu_custom_call.1']
    #allocation7 [shape = 'u8[4096]{0}', space=vmem, size = 0x1000, scoped, tag = 'input window, operand 2, single buffered']
    #allocation8 [shape = 'u8[131072]{0}', space=vmem, size = 0x20000, scoped, tag = 'output window, operand 0, single buffered']
    %8 = vsyncpa [#allocation3], 0
    %9 = vsyncpa [#allocation6], 0
    %10 = vsyncpa [#allocation4], 0
    // Predicated region
    $region2: #{tpu_custom_call.1} parent=1 // pred_check
      _
    $region3: #{tpu_custom_call.1} parent=1 // pred_check_branch
      %12 = sbr.rel (0) target = $region5
    $region4: #{tpu_custom_call.1} parent=1 // pred_region
      %s14 = ssub.s32 4096, 4096
      %15 = vsyncadd [#allocation3], %s14
      %s16 = sshll.u32 [#allocation2], 4
      %s17 = int_to_ptr.vmem [resolvable:$true] %s16
      %22 = dma.hbm_to_vmem [thread:$0]  %s0, 4096, %s17, [#allocation3], 128, 128, 8
    $region5: #{tpu_custom_call.1} parent=1 // pred_fallthru
      _
    // Predicated region
    $region6: #{tpu_custom_call.1} parent=1 // pred_check
      _
    $region7: #{tpu_custom_call.1} parent=1 // pred_check_branch
      %24 = sbr.rel (0) target = $region9
    $region8: #{tpu_custom_call.1} parent=1 // pred_region
      %s26 = ssub.s32 6144, 6144
      %27 = vsyncadd [#allocation6], %s26
      %s28 = sshll.u32 [#allocation5], 4
      %s29 = int_to_ptr.vmem [resolvable:$true] %s28
      %34 = dma.hbm_to_vmem [thread:$0]  %s1, 6144, %s29, [#allocation6], 128, 128, 8
    $region9: #{tpu_custom_call.1} parent=1 // pred_fallthru
      _
    // Predicated region
    $region10: #{tpu_custom_call.1} parent=1 // pred_check
      _
    $region11: #{tpu_custom_call.1} parent=1 // pred_check_branch
      %36 = sbr.rel (0) target = $region13
    $region12: #{tpu_custom_call.1} parent=1 // pred_region
      %s38 = ssub.s32 128, 128
      %39 = vsyncadd [#allocation6], %s38
      %s41 = sshll.u32 [#allocation7], 4
      %s42 = int_to_ptr.vmem [resolvable:$true] %s41
      %44 = dma.hbm_to_vmem [thread:$0]  %s2, 128, %s42, [#allocation6]
    $region13: #{tpu_custom_call.1} parent=1 // pred_fallthru
      _
    // Predicated region
    $region14: #{tpu_custom_call.1} parent=1 // pred_check
      _
    $region15: #{tpu_custom_call.1} parent=1 // pred_check_branch
      %46 = sbr.rel (0) target = $region17
    $region16: #{tpu_custom_call.1} parent=1 // pred_region
      %47 = dma.done [#allocation3], 4096
    $region17: #{tpu_custom_call.1} parent=1 // pred_fallthru
      _
    // Predicated region
    $region18: #{tpu_custom_call.1} parent=1 // pred_check
      _
    $region19: #{tpu_custom_call.1} parent=1 // pred_check_branch
      %49 = sbr.rel (0) target = $region21
    $region20: #{tpu_custom_call.1} parent=1 // pred_region
      %50 = dma.done [#allocation6], 6144
    $region21: #{tpu_custom_call.1} parent=1 // pred_fallthru
      _
    // Predicated region
    $region22: #{tpu_custom_call.1} parent=1 // pred_check
      _
    $region23: #{tpu_custom_call.1} parent=1 // pred_check_branch
      %52 = sbr.rel (0) target = $region25
    $region24: #{tpu_custom_call.1} parent=1 // pred_region
      %53 = dma.done [#allocation6], 128
    $region25: #{tpu_custom_call.1} parent=1 // pred_fallthru
      _
    %v55 = vld [vmem:[#allocation2] sm:$0xff]
    %v56 = vld [vmem:[#allocation2 + $0x8] sm:$0xff]
    %v57 = vld [vmem:[#allocation2 + $0x10] sm:$0xff]
    %v58 = vld [vmem:[#allocation2 + $0x18] sm:$0xff]
    %v59 = vld [vmem:[#allocation2 + $0x20] sm:$0xff]
    %v60 = vld [vmem:[#allocation2 + $0x28] sm:$0xff]
    %v61 = vld [vmem:[#allocation2 + $0x30] sm:$0xff]
    %v62 = vld [vmem:[#allocation2 + $0x38] sm:$0xff]
    %v63 = vld [vmem:[#allocation2 + $0x40] sm:$0xff]
    %v64 = vld [vmem:[#allocation2 + $0x48] sm:$0xff]
    %v65 = vld [vmem:[#allocation2 + $0x50] sm:$0xff]
    %v66 = vld [vmem:[#allocation2 + $0x58] sm:$0xff]
    %v67 = vld [vmem:[#allocation2 + $0x60] sm:$0xff]
    %v68 = vld [vmem:[#allocation2 + $0x68] sm:$0xff]
    %v69 = vld [vmem:[#allocation2 + $0x70] sm:$0xff]
    %v70 = vld [vmem:[#allocation2 + $0x78] sm:$0xff]
    %v71 = vld [vmem:[#allocation2 + $0x80] sm:$0xff]
    %v72 = vld [vmem:[#allocation2 + $0x88] sm:$0xff]
    %v73 = vld [vmem:[#allocation2 + $0x90] sm:$0xff]
    %v74 = vld [vmem:[#allocation2 + $0x98] sm:$0xff]
    %v75 = vld [vmem:[#allocation2 + $0xa0] sm:$0xff]
    %v76 = vld [vmem:[#allocation2 + $0xa8] sm:$0xff]
    %v77 = vld [vmem:[#allocation2 + $0xb0] sm:$0xff]
    %v78 = vld [vmem:[#allocation2 + $0xb8] sm:$0xff]
    %v79 = vld [vmem:[#allocation2 + $0xc0] sm:$0xff]
    %v80 = vld [vmem:[#allocation2 + $0xc8] sm:$0xff]
    %v81 = vld [vmem:[#allocation2 + $0xd0] sm:$0xff]
    %v82 = vld [vmem:[#allocation2 + $0xd8] sm:$0xff]
    %v83 = vld [vmem:[#allocation2 + $0xe0] sm:$0xff]
    %v84 = vld [vmem:[#allocation2 + $0xe8] sm:$0xff]
    %v85 = vld [vmem:[#allocation2 + $0xf0] sm:$0xff]
    %v86 = vld [vmem:[#allocation2 + $0xf8] sm:$0xff]
    %v87 = vpack.c.bf16 %v56, %v55
    %v88 = vpack.c.bf16 %v58, %v57
    %v89 = vpack.c.bf16 %v60, %v59
    %v90 = vpack.c.bf16 %v62, %v61
    %v91 = vpack.c.bf16 %v64, %v63
    %v92 = vpack.c.bf16 %v66, %v65
    %v93 = vpack.c.bf16 %v68, %v67
    %v94 = vpack.c.bf16 %v70, %v69
    %v95 = vpack.c.bf16 %v72, %v71
    %v96 = vpack.c.bf16 %v74, %v73
    %v97 = vpack.c.bf16 %v76, %v75
    %v98 = vpack.c.bf16 %v78, %v77
    %v99 = vpack.c.bf16 %v80, %v79
    %v100 = vpack.c.bf16 %v82, %v81
    %v101 = vpack.c.bf16 %v84, %v83
    %v102 = vpack.c.bf16 %v86, %v85
    %v103 = vld [vmem:[#allocation5] sm:$0xff]
    %v104 = vld [vmem:[#allocation5 + $0x8] sm:$0xff]
    %v105 = vld [vmem:[#allocation5 + $0x10] sm:$0xff]
    %v106 = vld [vmem:[#allocation5 + $0x18] sm:$0xff]
    %v107 = vld [vmem:[#allocation5 + $0x20] sm:$0xff]
    %v108 = vld [vmem:[#allocation5 + $0x28] sm:$0xff]
    %v109 = vld [vmem:[#allocation5 + $0x30] sm:$0xff]
    %v110 = vld [vmem:[#allocation5 + $0x38] sm:$0xff]
    %v111 = vld [vmem:[#allocation5 + $0x40] sm:$0xff]
    %v112 = vld [vmem:[#allocation5 + $0x48] sm:$0xff]
    %v113 = vld [vmem:[#allocation5 + $0x50] sm:$0xff]
    %v114 = vld [vmem:[#allocation5 + $0x58] sm:$0xff]
    %v115 = vld [vmem:[#allocation5 + $0x60] sm:$0xff]
    %v116 = vld [vmem:[#allocation5 + $0x68] sm:$0xff]
    %v117 = vld [vmem:[#allocation5 + $0x70] sm:$0xff]
    %v118 = vld [vmem:[#allocation5 + $0x78] sm:$0xff]
    %v119 = vld [vmem:[#allocation7] ss:$4 sm:$0x3]
    %v121 = vlaneseq
    %v122 = vshrl.u32 %v121, 7
    %v123 = vsub.s32 0, %v122
    %v124 = vrot.slane %v119, %v123
    %v125 = vlaneseq
    %v126 = vshrl.u32 %v125, 7
    %v127 = vsub.s32 1, %v126
    %v128 = vrot.slane %v119, %v127
    %v147 = vunpack.c.l.b16 %v103
    %v148 = vunpack.c.h.b16 %v103
    %v149 = vunpack.c.l.b16 %v104
    %v150 = vunpack.c.h.b16 %v104
    %v151 = vunpack.c.l.b16 %v105
    %v152 = vunpack.c.h.b16 %v105
    %v153 = vunpack.c.l.b16 %v106
    %v154 = vunpack.c.h.b16 %v106
    %v155 = vunpack.c.l.b16 %v107
    %v156 = vunpack.c.h.b16 %v107
    %v157 = vunpack.c.l.b16 %v108
    %v158 = vunpack.c.h.b16 %v108
    %v159 = vunpack.c.l.b16 %v109
    %v160 = vunpack.c.h.b16 %v109
    %v161 = vunpack.c.l.b16 %v110
    %v162 = vunpack.c.h.b16 %v110
    %v163 = vunpack.c.l.b16 %v111
    %v164 = vunpack.c.h.b16 %v111
    %v165 = vunpack.c.l.b16 %v112
    %v166 = vunpack.c.h.b16 %v112
    %v167 = vunpack.c.l.b16 %v113
    %v168 = vunpack.c.h.b16 %v113
    %v169 = vunpack.c.l.b16 %v114
    %v170 = vunpack.c.h.b16 %v114
    %v171 = vunpack.c.l.b16 %v115
    %v172 = vunpack.c.h.b16 %v115
    %v173 = vunpack.c.l.b16 %v116
    %v174 = vunpack.c.h.b16 %v116
    %v175 = vunpack.c.l.b16 %v117
    %v176 = vunpack.c.h.b16 %v117
    %v177 = vunpack.c.l.b16 %v118
    %v178 = vunpack.c.h.b16 %v118
    %v179 = vpack.c.b16 %v149, %v147
    %v180 = vpack.c.b16 %v150, %v148
    %v181 = vpack.c.b16 %v153, %v151
    %v182 = vpack.c.b16 %v154, %v152
    %v183 = vpack.c.b16 %v157, %v155
    %v184 = vpack.c.b16 %v158, %v156
    %v185 = vpack.c.b16 %v161, %v159
    %v186 = vpack.c.b16 %v162, %v160
    %v187 = vpack.c.b16 %v165, %v163
    %v188 = vpack.c.b16 %v166, %v164
    %v189 = vpack.c.b16 %v169, %v167
    %v190 = vpack.c.b16 %v170, %v168
    %v191 = vpack.c.b16 %v173, %v171
    %v192 = vpack.c.b16 %v174, %v172
    %v193 = vpack.c.b16 %v177, %v175
    %v194 = vpack.c.b16 %v178, %v176
    %211 = vmatprep.subr.bf16.mxu0 %v180
    %212 = vmatpush1.bf16.msra.mxu0 %v179
    %213 = vmatprep.subr.bf16.mxu0 %v182
    %214 = vmatpush1.bf16.msra.mxu0 %v181
    %215 = vmatprep.subr.bf16.mxu0 %v184
    %216 = vmatpush1.bf16.msra.mxu0 %v183
    %217 = vmatprep.subr.bf16.mxu0 %v186
    %218 = vmatpush1.bf16.msra.mxu0 %v185
    %219 = vmatprep.subr.bf16.mxu0 %v188
    %220 = vmatpush1.bf16.msra.mxu0 %v187
    %221 = vmatprep.subr.bf16.mxu0 %v190
    %222 = vmatpush1.bf16.msra.mxu0 %v189
    %223 = vmatprep.subr.bf16.mxu0 %v192
    %224 = vmatpush1.bf16.msra.mxu0 %v191
    %225 = vmatprep.subr.bf16.mxu0 %v194
    %226 = vmatpush1.bf16.msra.mxu0 %v193
    %227 = vmatprep.subr.bf16.mxu0 0
    %228 = vmatpush1.bf16.msra.mxu0 0
    %229 = vmatprep.subr.bf16.mxu0 0
    %230 = vmatpush1.bf16.msra.mxu0 0
    %231 = vmatprep.subr.bf16.mxu0 0
    %232 = vmatpush1.bf16.msra.mxu0 0
    %233 = vmatprep.subr.bf16.mxu0 0
    %234 = vmatpush1.bf16.msra.mxu0 0
    %235 = vmatprep.subr.bf16.mxu0 0
    %236 = vmatpush1.bf16.msra.mxu0 0
    %237 = vmatprep.subr.bf16.mxu0 0
    %238 = vmatpush1.bf16.msra.mxu0 0
    %239 = vmatprep.subr.bf16.mxu0 0
    %240 = vmatpush1.bf16.msra.mxu0 0
    %241 = vmatprep.subr.bf16.mxu0 0
    %242 = vmatpush1.bf16.msra.mxu0 0
    %243 = vmatprep.mubr.bf16.mxu0 0
    %244 = vmatmul.mubr.bf16.gmra.mrb[0].mxu0 %v87
    %v245 = vpop.f32.mrb[0].mxu0
    %v246 = vadd.f32 %v124, %v245
    %v247 = vpop.f32.mrb[0].mxu0
    %v248 = vadd.f32 %v128, %v247
    %v249 = vpop.f32.mrb[0].mxu0
    %v250 = vadd.f32 %v124, %v249
    %v251 = vpop.f32.mrb[0].mxu0
    %v252 = vadd.f32 %v128, %v251
    %253 = vmatprep.mubr.bf16.mxu0 0
    %254 = vmatmul.mubr.bf16.gmra.mrb[0].mxu0 %v88
    %v255 = vpop.f32.mrb[0].mxu0
    %v256 = vadd.f32 %v124, %v255
    %v257 = vpop.f32.mrb[0].mxu0
    %v258 = vadd.f32 %v128, %v257
    %v259 = vpop.f32.mrb[0].mxu0
    %v260 = vadd.f32 %v124, %v259
    %v261 = vpop.f32.mrb[0].mxu0
    %v262 = vadd.f32 %v128, %v261
    %263 = vmatprep.mubr.bf16.mxu0 0
    %264 = vmatmul.mubr.bf16.gmra.mrb[0].mxu0 %v89
    %v265 = vpop.f32.mrb[0].mxu0
    %v266 = vadd.f32 %v124, %v265
    %v267 = vpop.f32.mrb[0].mxu0
    %v268 = vadd.f32 %v128, %v267
    %v269 = vpop.f32.mrb[0].mxu0
    %v270 = vadd.f32 %v124, %v269
    %v271 = vpop.f32.mrb[0].mxu0
    %v272 = vadd.f32 %v128, %v271
    %273 = vmatprep.mubr.bf16.mxu0 0
    %274 = vmatmul.mubr.bf16.gmra.mrb[0].mxu0 %v90
    %v275 = vpop.f32.mrb[0].mxu0
    %v276 = vadd.f32 %v124, %v275
    %v277 = vpop.f32.mrb[0].mxu0
    %v278 = vadd.f32 %v128, %v277
    %v279 = vpop.f32.mrb[0].mxu0
    %v280 = vadd.f32 %v124, %v279
    %v281 = vpop.f32.mrb[0].mxu0
    %v282 = vadd.f32 %v128, %v281
    %283 = vmatprep.mubr.bf16.mxu0 0
    %284 = vmatmul.mubr.bf16.gmra.mrb[0].mxu0 %v91
    %v285 = vpop.f32.mrb[0].mxu0
    %v286 = vadd.f32 %v124, %v285
    %v287 = vpop.f32.mrb[0].mxu0
    %v288 = vadd.f32 %v128, %v287
    %v289 = vpop.f32.mrb[0].mxu0
    %v290 = vadd.f32 %v124, %v289
    %v291 = vpop.f32.mrb[0].mxu0
    %v292 = vadd.f32 %v128, %v291
    %293 = vmatprep.mubr.bf16.mxu0 0
    %294 = vmatmul.mubr.bf16.gmra.mrb[0].mxu0 %v92
    %v295 = vpop.f32.mrb[0].mxu0
    %v296 = vadd.f32 %v124, %v295
    %v297 = vpop.f32.mrb[0].mxu0
    %v298 = vadd.f32 %v128, %v297
    %v299 = vpop.f32.mrb[0].mxu0
    %v300 = vadd.f32 %v124, %v299
    %v301 = vpop.f32.mrb[0].mxu0
    %v302 = vadd.f32 %v128, %v301
    %303 = vmatprep.mubr.bf16.mxu0 0
    %304 = vmatmul.mubr.bf16.gmra.mrb[0].mxu0 %v93
    %v305 = vpop.f32.mrb[0].mxu0
    %v306 = vadd.f32 %v124, %v305
    %v307 = vpop.f32.mrb[0].mxu0
    %v308 = vadd.f32 %v128, %v307
    %v309 = vpop.f32.mrb[0].mxu0
    %v310 = vadd.f32 %v124, %v309
    %v311 = vpop.f32.mrb[0].mxu0
    %v312 = vadd.f32 %v128, %v311
    %313 = vmatprep.mubr.bf16.mxu0 0
    %314 = vmatmul.mubr.bf16.gmra.mrb[0].mxu0 %v94
    %v315 = vpop.f32.mrb[0].mxu0
    %v316 = vadd.f32 %v124, %v315
    %v317 = vpop.f32.mrb[0].mxu0
    %v318 = vadd.f32 %v128, %v317
    %v319 = vpop.f32.mrb[0].mxu0
    %v320 = vadd.f32 %v124, %v319
    %v321 = vpop.f32.mrb[0].mxu0
    %v322 = vadd.f32 %v128, %v321
    %323 = vmatprep.mubr.bf16.mxu0 0
    %324 = vmatmul.mubr.bf16.gmra.mrb[0].mxu0 %v95
    %v325 = vpop.f32.mrb[0].mxu0
    %v326 = vadd.f32 %v124, %v325
    %v327 = vpop.f32.mrb[0].mxu0
    %v328 = vadd.f32 %v128, %v327
    %v329 = vpop.f32.mrb[0].mxu0
    %v330 = vadd.f32 %v124, %v329
    %v331 = vpop.f32.mrb[0].mxu0
    %v332 = vadd.f32 %v128, %v331
    %333 = vmatprep.mubr.bf16.mxu0 0
    %334 = vmatmul.mubr.bf16.gmra.mrb[0].mxu0 %v96
    %v335 = vpop.f32.mrb[0].mxu0
    %v336 = vadd.f32 %v124, %v335
    %v337 = vpop.f32.mrb[0].mxu0
    %v338 = vadd.f32 %v128, %v337
    %v339 = vpop.f32.mrb[0].mxu0
    %v340 = vadd.f32 %v124, %v339
    %v341 = vpop.f32.mrb[0].mxu0
    %v342 = vadd.f32 %v128, %v341
    %343 = vmatprep.mubr.bf16.mxu0 0
    %344 = vmatmul.mubr.bf16.gmra.mrb[0].mxu0 %v97
    %v345 = vpop.f32.mrb[0].mxu0
    %v346 = vadd.f32 %v124, %v345
    %v347 = vpop.f32.mrb[0].mxu0
    %v348 = vadd.f32 %v128, %v347
    %v349 = vpop.f32.mrb[0].mxu0
    %v350 = vadd.f32 %v124, %v349
    %v351 = vpop.f32.mrb[0].mxu0
    %v352 = vadd.f32 %v128, %v351
    %353 = vmatprep.mubr.bf16.mxu0 0
    %354 = vmatmul.mubr.bf16.gmra.mrb[0].mxu0 %v98
    %v355 = vpop.f32.mrb[0].mxu0
    %v356 = vadd.f32 %v124, %v355
    %v357 = vpop.f32.mrb[0].mxu0
    %v358 = vadd.f32 %v128, %v357
    %v359 = vpop.f32.mrb[0].mxu0
    %v360 = vadd.f32 %v124, %v359
    %v361 = vpop.f32.mrb[0].mxu0
    %v362 = vadd.f32 %v128, %v361
    %363 = vmatprep.mubr.bf16.mxu0 0
    %364 = vmatmul.mubr.bf16.gmra.mrb[0].mxu0 %v99
    %v365 = vpop.f32.mrb[0].mxu0
    %v366 = vadd.f32 %v124, %v365
    %v367 = vpop.f32.mrb[0].mxu0
    %v368 = vadd.f32 %v128, %v367
    %v369 = vpop.f32.mrb[0].mxu0
    %v370 = vadd.f32 %v124, %v369
    %v371 = vpop.f32.mrb[0].mxu0
    %v372 = vadd.f32 %v128, %v371
    %373 = vmatprep.mubr.bf16.mxu0 0
    %374 = vmatmul.mubr.bf16.gmra.mrb[0].mxu0 %v100
    %v375 = vpop.f32.mrb[0].mxu0
    %v376 = vadd.f32 %v124, %v375
    %v377 = vpop.f32.mrb[0].mxu0
    %v378 = vadd.f32 %v128, %v377
    %v379 = vpop.f32.mrb[0].mxu0
    %v380 = vadd.f32 %v124, %v379
    %v381 = vpop.f32.mrb[0].mxu0
    %v382 = vadd.f32 %v128, %v381
    %383 = vmatprep.mubr.bf16.mxu0 0
    %384 = vmatmul.mubr.bf16.gmra.mrb[0].mxu0 %v101
    %v385 = vpop.f32.mrb[0].mxu0
    %v386 = vadd.f32 %v124, %v385
    %v387 = vpop.f32.mrb[0].mxu0
    %v388 = vadd.f32 %v128, %v387
    %v389 = vpop.f32.mrb[0].mxu0
    %v390 = vadd.f32 %v124, %v389
    %v391 = vpop.f32.mrb[0].mxu0
    %v392 = vadd.f32 %v128, %v391
    %393 = vmatprep.mubr.bf16.mxu0 0
    %394 = vmatmul.mubr.bf16.gmra.mrb[0].mxu0 %v102
    %v395 = vpop.f32.mrb[0].mxu0
    %v396 = vadd.f32 %v124, %v395
    %v397 = vpop.f32.mrb[0].mxu0
    %v398 = vadd.f32 %v128, %v397
    %v399 = vpop.f32.mrb[0].mxu0
    %v400 = vadd.f32 %v124, %v399
    %v401 = vpop.f32.mrb[0].mxu0
    %v402 = vadd.f32 %v128, %v401
    %403 = vdwg.mxu0
    %v404 = vmax.f32 %v246, 0.0
    %v405 = vmax.f32 %v250, 0.0
    %v406 = vmax.f32 %v256, 0.0
    %v407 = vmax.f32 %v260, 0.0
    %v408 = vmax.f32 %v266, 0.0
    %v409 = vmax.f32 %v270, 0.0
    %v410 = vmax.f32 %v276, 0.0
    %v411 = vmax.f32 %v280, 0.0
    %v412 = vmax.f32 %v286, 0.0
    %v413 = vmax.f32 %v290, 0.0
    %v414 = vmax.f32 %v296, 0.0
    %v415 = vmax.f32 %v300, 0.0
    %v416 = vmax.f32 %v306, 0.0
    %v417 = vmax.f32 %v310, 0.0
    %v418 = vmax.f32 %v316, 0.0
    %v419 = vmax.f32 %v320, 0.0
    %v420 = vmax.f32 %v326, 0.0
    %v421 = vmax.f32 %v330, 0.0
    %v422 = vmax.f32 %v336, 0.0
    %v423 = vmax.f32 %v340, 0.0
    %v424 = vmax.f32 %v346, 0.0
    %v425 = vmax.f32 %v350, 0.0
    %v426 = vmax.f32 %v356, 0.0
    %v427 = vmax.f32 %v360, 0.0
    %v428 = vmax.f32 %v366, 0.0
    %v429 = vmax.f32 %v370, 0.0
    %v430 = vmax.f32 %v376, 0.0
    %v431 = vmax.f32 %v380, 0.0
    %v432 = vmax.f32 %v386, 0.0
    %v433 = vmax.f32 %v390, 0.0
    %v434 = vmax.f32 %v396, 0.0
    %v435 = vmax.f32 %v400, 0.0
    %v436 = vxor.u32 %v248, 2147483648
    %v437 = vxor.u32 %v252, 2147483648
    %v438 = vxor.u32 %v258, 2147483648
    %v439 = vxor.u32 %v262, 2147483648
    %v440 = vxor.u32 %v268, 2147483648
    %v441 = vxor.u32 %v272, 2147483648
    %v442 = vxor.u32 %v278, 2147483648
    %v443 = vxor.u32 %v282, 2147483648
    %v444 = vxor.u32 %v288, 2147483648
    %v445 = vxor.u32 %v292, 2147483648
    %v446 = vxor.u32 %v298, 2147483648
    %v447 = vxor.u32 %v302, 2147483648
    %v448 = vxor.u32 %v308, 2147483648
    %v449 = vxor.u32 %v312, 2147483648
    %v450 = vxor.u32 %v318, 2147483648
    %v451 = vxor.u32 %v322, 2147483648
    %v452 = vxor.u32 %v328, 2147483648
    %v453 = vxor.u32 %v332, 2147483648
    %v454 = vxor.u32 %v338, 2147483648
    %v455 = vxor.u32 %v342, 2147483648
    %v456 = vxor.u32 %v348, 2147483648
    %v457 = vxor.u32 %v352, 2147483648
    %v458 = vxor.u32 %v358, 2147483648
    %v459 = vxor.u32 %v362, 2147483648
    %v460 = vxor.u32 %v368, 2147483648
    %v461 = vxor.u32 %v372, 2147483648
    %v462 = vxor.u32 %v378, 2147483648
    %v463 = vxor.u32 %v382, 2147483648
    %v464 = vxor.u32 %v388, 2147483648
    %v465 = vxor.u32 %v392, 2147483648
    %v466 = vxor.u32 %v398, 2147483648
    %v467 = vxor.u32 %v402, 2147483648
    %v468 = vmul.f32 %v436, 1.442695
    %v469 = vpow.pop %v468
    %v470 = vmul.f32 %v437, 1.442695
    %v471 = vpow.pop %v470
    %v472 = vmul.f32 %v438, 1.442695
    %v473 = vpow.pop %v472
    %v474 = vmul.f32 %v439, 1.442695
    %v475 = vpow.pop %v474
    %v476 = vmul.f32 %v440, 1.442695
    %v477 = vpow.pop %v476
    %v478 = vmul.f32 %v441, 1.442695
    %v479 = vpow.pop %v478
    %v480 = vmul.f32 %v442, 1.442695
    %v481 = vpow.pop %v480
    %v482 = vmul.f32 %v443, 1.442695
    %v483 = vpow.pop %v482
    %v484 = vmul.f32 %v444, 1.442695
    %v485 = vpow.pop %v484
    %v486 = vmul.f32 %v445, 1.442695
    %v487 = vpow.pop %v486
    %v488 = vmul.f32 %v446, 1.442695
    %v489 = vpow.pop %v488
    %v490 = vmul.f32 %v447, 1.442695
    %v491 = vpow.pop %v490
    %v492 = vmul.f32 %v448, 1.442695
    %v493 = vpow.pop %v492
    %v494 = vmul.f32 %v449, 1.442695
    %v495 = vpow.pop %v494
    %v496 = vmul.f32 %v450, 1.442695
    %v497 = vpow.pop %v496
    %v498 = vmul.f32 %v451, 1.442695
    %v499 = vpow.pop %v498
    %v500 = vmul.f32 %v452, 1.442695
    %v501 = vpow.pop %v500
    %v502 = vmul.f32 %v453, 1.442695
    %v503 = vpow.pop %v502
    %v504 = vmul.f32 %v454, 1.442695
    %v505 = vpow.pop %v504
    %v506 = vmul.f32 %v455, 1.442695
    %v507 = vpow.pop %v506
    %v508 = vmul.f32 %v456, 1.442695
    %v509 = vpow.pop %v508
    %v510 = vmul.f32 %v457, 1.442695
    %v511 = vpow.pop %v510
    %v512 = vmul.f32 %v458, 1.442695
    %v513 = vpow.pop %v512
    %v514 = vmul.f32 %v459, 1.442695
    %v515 = vpow.pop %v514
    %v516 = vmul.f32 %v460, 1.442695
    %v517 = vpow.pop %v516
    %v518 = vmul.f32 %v461, 1.442695
    %v519 = vpow.pop %v518
    %v520 = vmul.f32 %v462, 1.442695
    %v521 = vpow.pop %v520
    %v522 = vmul.f32 %v463, 1.442695
    %v523 = vpow.pop %v522
    %v524 = vmul.f32 %v464, 1.442695
    %v525 = vpow.pop %v524
    %v526 = vmul.f32 %v465, 1.442695
    %v527 = vpow.pop %v526
    %v528 = vmul.f32 %v466, 1.442695
    %v529 = vpow.pop %v528
    %v530 = vmul.f32 %v467, 1.442695
    %v531 = vpow.pop %v530
    %v532 = vadd.f32 %v469, 1.0
    %v533 = vadd.f32 %v471, 1.0
    %v534 = vadd.f32 %v473, 1.0
    %v535 = vadd.f32 %v475, 1.0
    %v536 = vadd.f32 %v477, 1.0
    %v537 = vadd.f32 %v479, 1.0
    %v538 = vadd.f32 %v481, 1.0
    %v539 = vadd.f32 %v483, 1.0
    %v540 = vadd.f32 %v485, 1.0
    %v541 = vadd.f32 %v487, 1.0
    %v542 = vadd.f32 %v489, 1.0
    %v543 = vadd.f32 %v491, 1.0
    %v544 = vadd.f32 %v493, 1.0
    %v545 = vadd.f32 %v495, 1.0
    %v546 = vadd.f32 %v497, 1.0
    %v547 = vadd.f32 %v499, 1.0
    %v548 = vadd.f32 %v501, 1.0
    %v549 = vadd.f32 %v503, 1.0
    %v550 = vadd.f32 %v505, 1.0
    %v551 = vadd.f32 %v507, 1.0
    %v552 = vadd.f32 %v509, 1.0
    %v553 = vadd.f32 %v511, 1.0
    %v554 = vadd.f32 %v513, 1.0
    %v555 = vadd.f32 %v515, 1.0
    %v556 = vadd.f32 %v517, 1.0
    %v557 = vadd.f32 %v519, 1.0
    %v558 = vadd.f32 %v521, 1.0
    %v559 = vadd.f32 %v523, 1.0
    %v560 = vadd.f32 %v525, 1.0
    %v561 = vadd.f32 %v527, 1.0
    %v562 = vadd.f32 %v529, 1.0
    %v563 = vadd.f32 %v531, 1.0
    %v564 = vrcp.pop %v532
    %v565 = vmul.f32 1.0, %v564
    %v566 = vrcp.pop %v533
    %v567 = vmul.f32 1.0, %v566
    %v568 = vrcp.pop %v534
    %v569 = vmul.f32 1.0, %v568
    %v570 = vrcp.pop %v535
    %v571 = vmul.f32 1.0, %v570
    %v572 = vrcp.pop %v536
    %v573 = vmul.f32 1.0, %v572
    %v574 = vrcp.pop %v537
    %v575 = vmul.f32 1.0, %v574
    %v576 = vrcp.pop %v538
    %v577 = vmul.f32 1.0, %v576
    %v578 = vrcp.pop %v539
    %v579 = vmul.f32 1.0, %v578
    %v580 = vrcp.pop %v540
    %v581 = vmul.f32 1.0, %v580
    %v582 = vrcp.pop %v541
    %v583 = vmul.f32 1.0, %v582
    %v584 = vrcp.pop %v542
    %v585 = vmul.f32 1.0, %v584
    %v586 = vrcp.pop %v543
    %v587 = vmul.f32 1.0, %v586
    %v588 = vrcp.pop %v544
    %v589 = vmul.f32 1.0, %v588
    %v590 = vrcp.pop %v545
    %v591 = vmul.f32 1.0, %v590
    %v592 = vrcp.pop %v546
    %v593 = vmul.f32 1.0, %v592
    %v594 = vrcp.pop %v547
    %v595 = vmul.f32 1.0, %v594
    %v596 = vrcp.pop %v548
    %v597 = vmul.f32 1.0, %v596
    %v598 = vrcp.pop %v549
    %v599 = vmul.f32 1.0, %v598
    %v600 = vrcp.pop %v550
    %v601 = vmul.f32 1.0, %v600
    %v602 = vrcp.pop %v551
    %v603 = vmul.f32 1.0, %v602
    %v604 = vrcp.pop %v552
    %v605 = vmul.f32 1.0, %v604
    %v606 = vrcp.pop %v553
    %v607 = vmul.f32 1.0, %v606
    %v608 = vrcp.pop %v554
    %v609 = vmul.f32 1.0, %v608
    %v610 = vrcp.pop %v555
    %v611 = vmul.f32 1.0, %v610
    %v612 = vrcp.pop %v556
    %v613 = vmul.f32 1.0, %v612
    %v614 = vrcp.pop %v557
    %v615 = vmul.f32 1.0, %v614
    %v616 = vrcp.pop %v558
    %v617 = vmul.f32 1.0, %v616
    %v618 = vrcp.pop %v559
    %v619 = vmul.f32 1.0, %v618
    %v620 = vrcp.pop %v560
    %v621 = vmul.f32 1.0, %v620
    %v622 = vrcp.pop %v561
    %v623 = vmul.f32 1.0, %v622
    %v624 = vrcp.pop %v562
    %v625 = vmul.f32 1.0, %v624
    %v626 = vrcp.pop %v563
    %v627 = vmul.f32 1.0, %v626
    %v628 = vsub.f32 %v55, %v404
    %v629 = vsub.f32 %v56, %v405
    %v630 = vsub.f32 %v57, %v406
    %v631 = vsub.f32 %v58, %v407
    %v632 = vsub.f32 %v59, %v408
    %v633 = vsub.f32 %v60, %v409
    %v634 = vsub.f32 %v61, %v410
    %v635 = vsub.f32 %v62, %v411
    %v636 = vsub.f32 %v63, %v412
    %v637 = vsub.f32 %v64, %v413
    %v638 = vsub.f32 %v65, %v414
    %v639 = vsub.f32 %v66, %v415
    %v640 = vsub.f32 %v67, %v416
    %v641 = vsub.f32 %v68, %v417
    %v642 = vsub.f32 %v69, %v418
    %v643 = vsub.f32 %v70, %v419
    %v644 = vsub.f32 %v71, %v420
    %v645 = vsub.f32 %v72, %v421
    %v646 = vsub.f32 %v73, %v422
    %v647 = vsub.f32 %v74, %v423
    %v648 = vsub.f32 %v75, %v424
    %v649 = vsub.f32 %v76, %v425
    %v650 = vsub.f32 %v77, %v426
    %v651 = vsub.f32 %v78, %v427
    %v652 = vsub.f32 %v79, %v428
    %v653 = vsub.f32 %v80, %v429
    %v654 = vsub.f32 %v81, %v430
    %v655 = vsub.f32 %v82, %v431
    %v656 = vsub.f32 %v83, %v432
    %v657 = vsub.f32 %v84, %v433
    %v658 = vsub.f32 %v85, %v434
    %v659 = vsub.f32 %v86, %v435
    %v660 = vmul.f32 %v565, %v628
    %v661 = vmul.f32 %v567, %v629
    %v662 = vmul.f32 %v569, %v630
    %v663 = vmul.f32 %v571, %v631
    %v664 = vmul.f32 %v573, %v632
    %v665 = vmul.f32 %v575, %v633
    %v666 = vmul.f32 %v577, %v634
    %v667 = vmul.f32 %v579, %v635
    %v668 = vmul.f32 %v581, %v636
    %v669 = vmul.f32 %v583, %v637
    %v670 = vmul.f32 %v585, %v638
    %v671 = vmul.f32 %v587, %v639
    %v672 = vmul.f32 %v589, %v640
    %v673 = vmul.f32 %v591, %v641
    %v674 = vmul.f32 %v593, %v642
    %v675 = vmul.f32 %v595, %v643
    %v676 = vmul.f32 %v597, %v644
    %v677 = vmul.f32 %v599, %v645
    %v678 = vmul.f32 %v601, %v646
    %v679 = vmul.f32 %v603, %v647
    %v680 = vmul.f32 %v605, %v648
    %v681 = vmul.f32 %v607, %v649
    %v682 = vmul.f32 %v609, %v650
    %v683 = vmul.f32 %v611, %v651
    %v684 = vmul.f32 %v613, %v652
    %v685 = vmul.f32 %v615, %v653
    %v686 = vmul.f32 %v617, %v654
    %v687 = vmul.f32 %v619, %v655
    %v688 = vmul.f32 %v621, %v656
    %v689 = vmul.f32 %v623, %v657
    %v690 = vmul.f32 %v625, %v658
    %v691 = vmul.f32 %v627, %v659
    %v692 = vadd.f32 %v404, %v660
    %v693 = vadd.f32 %v405, %v661
    %v694 = vadd.f32 %v406, %v662
    %v695 = vadd.f32 %v407, %v663
    %v696 = vadd.f32 %v408, %v664
    %v697 = vadd.f32 %v409, %v665
    %v698 = vadd.f32 %v410, %v666
    %v699 = vadd.f32 %v411, %v667
    %v700 = vadd.f32 %v412, %v668
    %v701 = vadd.f32 %v413, %v669
    %v702 = vadd.f32 %v414, %v670
    %v703 = vadd.f32 %v415, %v671
    %v704 = vadd.f32 %v416, %v672
    %v705 = vadd.f32 %v417, %v673
    %v706 = vadd.f32 %v418, %v674
    %v707 = vadd.f32 %v419, %v675
    %v708 = vadd.f32 %v420, %v676
    %v709 = vadd.f32 %v421, %v677
    %v710 = vadd.f32 %v422, %v678
    %v711 = vadd.f32 %v423, %v679
    %v712 = vadd.f32 %v424, %v680
    %v713 = vadd.f32 %v425, %v681
    %v714 = vadd.f32 %v426, %v682
    %v715 = vadd.f32 %v427, %v683
    %v716 = vadd.f32 %v428, %v684
    %v717 = vadd.f32 %v429, %v685
    %v718 = vadd.f32 %v430, %v686
    %v719 = vadd.f32 %v431, %v687
    %v720 = vadd.f32 %v432, %v688
    %v721 = vadd.f32 %v433, %v689
    %v722 = vadd.f32 %v434, %v690
    %v723 = vadd.f32 %v435, %v691
    %v724 = vpack.c.bf16 %v693, %v692
    %v725 = vpack.c.bf16 %v695, %v694
    %v726 = vpack.c.bf16 %v697, %v696
    %v727 = vpack.c.bf16 %v699, %v698
    %v728 = vpack.c.bf16 %v701, %v700
    %v729 = vpack.c.bf16 %v703, %v702
    %v730 = vpack.c.bf16 %v705, %v704
    %v731 = vpack.c.bf16 %v707, %v706
    %v732 = vpack.c.bf16 %v709, %v708
    %v733 = vpack.c.bf16 %v711, %v710
    %v734 = vpack.c.bf16 %v713, %v712
    %v735 = vpack.c.bf16 %v715, %v714
    %v736 = vpack.c.bf16 %v717, %v716
    %v737 = vpack.c.bf16 %v719, %v718
    %v738 = vpack.c.bf16 %v721, %v720
    %v739 = vpack.c.bf16 %v723, %v722
    %s740 = scalar_lea.vmem [#allocation5], 128
    %v741 = vld [vmem:[%s740] sm:$0xff]
    %v742 = vld [vmem:[%s740 + $0x8] sm:$0xff]
    %v743 = vld [vmem:[%s740 + $0x10] sm:$0xff]
    %v744 = vld [vmem:[%s740 + $0x18] sm:$0xff]
    %v745 = vld [vmem:[%s740 + $0x20] sm:$0xff]
    %v746 = vld [vmem:[%s740 + $0x28] sm:$0xff]
    %v747 = vld [vmem:[%s740 + $0x30] sm:$0xff]
    %v748 = vld [vmem:[%s740 + $0x38] sm:$0xff]
    %v749 = vld [vmem:[%s740 + $0x40] sm:$0xff]
    %v750 = vld [vmem:[%s740 + $0x48] sm:$0xff]
    %v751 = vld [vmem:[%s740 + $0x50] sm:$0xff]
    %v752 = vld [vmem:[%s740 + $0x58] sm:$0xff]
    %v753 = vld [vmem:[%s740 + $0x60] sm:$0xff]
    %v754 = vld [vmem:[%s740 + $0x68] sm:$0xff]
    %v755 = vld [vmem:[%s740 + $0x70] sm:$0xff]
    %v756 = vld [vmem:[%s740 + $0x78] sm:$0xff]
    %s757 = scalar_lea.vmem [#allocation7], 1
    %v758 = vld [vmem:[%s757] ss:$4 sm:$0x3]
    %v760 = vlaneseq
    %v761 = vshrl.u32 %v760, 7
    %v762 = vsub.s32 0, %v761
    %v763 = vrot.slane %v758, %v762
    %v764 = vlaneseq
    %v765 = vshrl.u32 %v764, 7
    %v766 = vsub.s32 1, %v765
    %v767 = vrot.slane %v758, %v766
    %v786 = vunpack.c.l.b16 %v741
    %v787 = vunpack.c.h.b16 %v741
    %v788 = vunpack.c.l.b16 %v742
    %v789 = vunpack.c.h.b16 %v742
    %v790 = vunpack.c.l.b16 %v743
    %v791 = vunpack.c.h.b16 %v743
    %v792 = vunpack.c.l.b16 %v744
    %v793 = vunpack.c.h.b16 %v744
    %v794 = vunpack.c.l.b16 %v745
    %v795 = vunpack.c.h.b16 %v745
    %v796 = vunpack.c.l.b16 %v746
    %v797 = vunpack.c.h.b16 %v746
    %v798 = vunpack.c.l.b16 %v747
    %v799 = vunpack.c.h.b16 %v747
    %v800 = vunpack.c.l.b16 %v748
    %v801 = vunpack.c.h.b16 %v748
    %v802 = vunpack.c.l.b16 %v749
    %v803 = vunpack.c.h.b16 %v749
    %v804 = vunpack.c.l.b16 %v750
    %v805 = vunpack.c.h.b16 %v750
    %v806 = vunpack.c.l.b16 %v751
    %v807 = vunpack.c.h.b16 %v751
    %v808 = vunpack.c.l.b16 %v752
    %v809 = vunpack.c.h.b16 %v752
    %v810 = vunpack.c.l.b16 %v753
    %v811 = vunpack.c.h.b16 %v753
    %v812 = vunpack.c.l.b16 %v754
    %v813 = vunpack.c.h.b16 %v754
    %v814 = vunpack.c.l.b16 %v755
    %v815 = vunpack.c.h.b16 %v755
    %v816 = vunpack.c.l.b16 %v756
    %v817 = vunpack.c.h.b16 %v756
    %v818 = vpack.c.b16 %v788, %v786
    %v819 = vpack.c.b16 %v789, %v787
    %v820 = vpack.c.b16 %v792, %v790
    %v821 = vpack.c.b16 %v793, %v791
    %v822 = vpack.c.b16 %v796, %v794
    %v823 = vpack.c.b16 %v797, %v795
    %v824 = vpack.c.b16 %v800, %v798
    %v825 = vpack.c.b16 %v801, %v799
    %v826 = vpack.c.b16 %v804, %v802
    %v827 = vpack.c.b16 %v805, %v803
    %v828 = vpack.c.b16 %v808, %v806
    %v829 = vpack.c.b16 %v809, %v807
    %v830 = vpack.c.b16 %v812, %v810
    %v831 = vpack.c.b16 %v813, %v811
    %v832 = vpack.c.b16 %v816, %v814
    %v833 = vpack.c.b16 %v817, %v815
    %850 = vmatprep.subr.bf16.mxu0 %v819
    %851 = vmatpush1.bf16.msra.mxu0 %v818
    %852 = vmatprep.subr.bf16.mxu0 %v821
    %853 = vmatpush1.bf16.msra.mxu0 %v820
    %854 = vmatprep.subr.bf16.mxu0 %v823
    %855 = vmatpush1.bf16.msra.mxu0 %v822
    %856 = vmatprep.subr.bf16.mxu0 %v825
    %857 = vmatpush1.bf16.msra.mxu0 %v824
    %858 = vmatprep.subr.bf16.mxu0 %v827
    %859 = vmatpush1.bf16.msra.mxu0 %v826
    %860 = vmatprep.subr.bf16.mxu0 %v829
    %861 = vmatpush1.bf16.msra.mxu0 %v828
    %862 = vmatprep.subr.bf16.mxu0 %v831
    %863 = vmatpush1.bf16.msra.mxu0 %v830
    %864 = vmatprep.subr.bf16.mxu0 %v833
    %865 = vmatpush1.bf16.msra.mxu0 %v832
    %866 = vmatprep.subr.bf16.mxu0 0
    %867 = vmatpush1.bf16.msra.mxu0 0
    %868 = vmatprep.subr.bf16.mxu0 0
    %869 = vmatpush1.bf16.msra.mxu0 0
    %870 = vmatprep.subr.bf16.mxu0 0
    %871 = vmatpush1.bf16.msra.mxu0 0
    %872 = vmatprep.subr.bf16.mxu0 0
    %873 = vmatpush1.bf16.msra.mxu0 0
    %874 = vmatprep.subr.bf16.mxu0 0
    %875 = vmatpush1.bf16.msra.mxu0 0
    %876 = vmatprep.subr.bf16.mxu0 0
    %877 = vmatpush1.bf16.msra.mxu0 0
    %878 = vmatprep.subr.bf16.mxu0 0
    %879 = vmatpush1.bf16.msra.mxu0 0
    %880 = vmatprep.subr.bf16.mxu0 0
    %881 = vmatpush1.bf16.msra.mxu0 0
    %882 = vmatprep.mubr.bf16.mxu0 0
    %883 = vmatmul.mubr.bf16.gmra.mrb[0].mxu0 %v724
    %v884 = vpop.f32.mrb[0].mxu0
    %v885 = vadd.f32 %v763, %v884
    %v886 = vpop.f32.mrb[0].mxu0
    %v887 = vadd.f32 %v767, %v886
    %v888 = vpop.f32.mrb[0].mxu0
    %v889 = vadd.f32 %v763, %v888
    %v890 = vpop.f32.mrb[0].mxu0
    %v891 = vadd.f32 %v767, %v890
    %892 = vmatprep.mubr.bf16.mxu0 0
    %893 = vmatmul.mubr.bf16.gmra.mrb[0].mxu0 %v725
    %v894 = vpop.f32.mrb[0].mxu0
    %v895 = vadd.f32 %v763, %v894
    %v896 = vpop.f32.mrb[0].mxu0
    %v897 = vadd.f32 %v767, %v896
    %v898 = vpop.f32.mrb[0].mxu0
    %v899 = vadd.f32 %v763, %v898
    %v900 = vpop.f32.mrb[0].mxu0
    %v901 = vadd.f32 %v767, %v900
    %902 = vmatprep.mubr.bf16.mxu0 0
    %903 = vmatmul.mubr.bf16.gmra.mrb[0].mxu0 %v726
    %v904 = vpop.f32.mrb[0].mxu0
    %v905 = vadd.f32 %v763, %v904
    %v906 = vpop.f32.mrb[0].mxu0
    %v907 = vadd.f32 %v767, %v906
    %v908 = vpop.f32.mrb[0].mxu0
    %v909 = vadd.f32 %v763, %v908
    %v910 = vpop.f32.mrb[0].mxu0
    %v911 = vadd.f32 %v767, %v910
    %912 = vmatprep.mubr.bf16.mxu0 0
    %913 = vmatmul.mubr.bf16.gmra.mrb[0].mxu0 %v727
    %v914 = vpop.f32.mrb[0].mxu0
    %v915 = vadd.f32 %v763, %v914
    %v916 = vpop.f32.mrb[0].mxu0
    %v917 = vadd.f32 %v767, %v916
    %v918 = vpop.f32.mrb[0].mxu0
    %v919 = vadd.f32 %v763, %v918
    %v920 = vpop.f32.mrb[0].mxu0
    %v921 = vadd.f32 %v767, %v920
    %922 = vmatprep.mubr.bf16.mxu0 0
    %923 = vmatmul.mubr.bf16.gmra.mrb[0].mxu0 %v728
    %v924 = vpop.f32.mrb[0].mxu0
    %v925 = vadd.f32 %v763, %v924
    %v926 = vpop.f32.mrb[0].mxu0
    %v927 = vadd.f32 %v767, %v926
    %v928 = vpop.f32.mrb[0].mxu0
    %v929 = vadd.f32 %v763, %v928
    %v930 = vpop.f32.mrb[0].mxu0
    %v931 = vadd.f32 %v767, %v930
    %932 = vmatprep.mubr.bf16.mxu0 0
    %933 = vmatmul.mubr.bf16.gmra.mrb[0].mxu0 %v729
    %v934 = vpop.f32.mrb[0].mxu0
    %v935 = vadd.f32 %v763, %v934
    %v936 = vpop.f32.mrb[0].mxu0
    %v937 = vadd.f32 %v767, %v936
    %v938 = vpop.f32.mrb[0].mxu0
    %v939 = vadd.f32 %v763, %v938
    %v940 = vpop.f32.mrb[0].mxu0
    %v941 = vadd.f32 %v767, %v940
    %942 = vmatprep.mubr.bf16.mxu0 0
    %943 = vmatmul.mubr.bf16.gmra.mrb[0].mxu0 %v730
    %v944 = vpop.f32.mrb[0].mxu0
    %v945 = vadd.f32 %v763, %v944
    %v946 = vpop.f32.mrb[0].mxu0
    %v947 = vadd.f32 %v767, %v946
    %v948 = vpop.f32.mrb[0].mxu0
    %v949 = vadd.f32 %v763, %v948
    %v950 = vpop.f32.mrb[0].mxu0
    %v951 = vadd.f32 %v767, %v950
    %952 = vmatprep.mubr.bf16.mxu0 0
    %953 = vmatmul.mubr.bf16.gmra.mrb[0].mxu0 %v731
    %v954 = vpop.f32.mrb[0].mxu0
    %v955 = vadd.f32 %v763, %v954
    %v956 = vpop.f32.mrb[0].mxu0
    %v957 = vadd.f32 %v767, %v956
    %v958 = vpop.f32.mrb[0].mxu0
    %v959 = vadd.f32 %v763, %v958
    %v960 = vpop.f32.mrb[0].mxu0
    %v961 = vadd.f32 %v767, %v960
    %962 = vmatprep.mubr.bf16.mxu0 0
    %963 = vmatmul.mubr.bf16.gmra.mrb[0].mxu0 %v732
    %v964 = vpop.f32.mrb[0].mxu0
    %v965 = vadd.f32 %v763, %v964
    %v966 = vpop.f32.mrb[0].mxu0
    %v967 = vadd.f32 %v767, %v966
    %v968 = vpop.f32.mrb[0].mxu0
    %v969 = vadd.f32 %v763, %v968
    %v970 = vpop.f32.mrb[0].mxu0
    %v971 = vadd.f32 %v767, %v970
    %972 = vmatprep.mubr.bf16.mxu0 0
    %973 = vmatmul.mubr.bf16.gmra.mrb[0].mxu0 %v733
    %v974 = vpop.f32.mrb[0].mxu0
    %v975 = vadd.f32 %v763, %v974
    %v976 = vpop.f32.mrb[0].mxu0
    %v977 = vadd.f32 %v767, %v976
    %v978 = vpop.f32.mrb[0].mxu0
    %v979 = vadd.f32 %v763, %v978
    %v980 = vpop.f32.mrb[0].mxu0
    %v981 = vadd.f32 %v767, %v980
    %982 = vmatprep.mubr.bf16.mxu0 0
    %983 = vmatmul.mubr.bf16.gmra.mrb[0].mxu0 %v734
    %v984 = vpop.f32.mrb[0].mxu0
    %v985 = vadd.f32 %v763, %v984
    %v986 = vpop.f32.mrb[0].mxu0
    %v987 = vadd.f32 %v767, %v986
    %v988 = vpop.f32.mrb[0].mxu0
    %v989 = vadd.f32 %v763, %v988
    %v990 = vpop.f32.mrb[0].mxu0
    %v991 = vadd.f32 %v767, %v990
    %992 = vmatprep.mubr.bf16.mxu0 0
    %993 = vmatmul.mubr.bf16.gmra.mrb[0].mxu0 %v735
    %v994 = vpop.f32.mrb[0].mxu0
    %v995 = vadd.f32 %v763, %v994
    %v996 = vpop.f32.mrb[0].mxu0
    %v997 = vadd.f32 %v767, %v996
    %v998 = vpop.f32.mrb[0].mxu0
    %v999 = vadd.f32 %v763, %v998
    %v1000 = vpop.f32.mrb[0].mxu0
    %v1001 = vadd.f32 %v767, %v1000
    %1002 = vmatprep.mubr.bf16.mxu0 0
    %1003 = vmatmul.mubr.bf16.gmra.mrb[0].mxu0 %v736
    %v1004 = vpop.f32.mrb[0].mxu0
    %v1005 = vadd.f32 %v763, %v1004
    %v1006 = vpop.f32.mrb[0].mxu0
    %v1007 = vadd.f32 %v767, %v1006
    %v1008 = vpop.f32.mrb[0].mxu0
    %v1009 = vadd.f32 %v763, %v1008
    %v1010 = vpop.f32.mrb[0].mxu0
    %v1011 = vadd.f32 %v767, %v1010
    %1012 = vmatprep.mubr.bf16.mxu0 0
    %1013 = vmatmul.mubr.bf16.gmra.mrb[0].mxu0 %v737
    %v1014 = vpop.f32.mrb[0].mxu0
    %v1015 = vadd.f32 %v763, %v1014
    %v1016 = vpop.f32.mrb[0].mxu0
    %v1017 = vadd.f32 %v767, %v1016
    %v1018 = vpop.f32.mrb[0].mxu0
    %v1019 = vadd.f32 %v763, %v1018
    %v1020 = vpop.f32.mrb[0].mxu0
    %v1021 = vadd.f32 %v767, %v1020
    %1022 = vmatprep.mubr.bf16.mxu0 0
    %1023 = vmatmul.mubr.bf16.gmra.mrb[0].mxu0 %v738
    %v1024 = vpop.f32.mrb[0].mxu0
    %v1025 = vadd.f32 %v763, %v1024
    %v1026 = vpop.f32.mrb[0].mxu0
    %v1027 = vadd.f32 %v767, %v1026
    %v1028 = vpop.f32.mrb[0].mxu0
    %v1029 = vadd.f32 %v763, %v1028
    %v1030 = vpop.f32.mrb[0].mxu0
    %v1031 = vadd.f32 %v767, %v1030
    %1032 = vmatprep.mubr.bf16.mxu0 0
    %1033 = vmatmul.mubr.bf16.gmra.mrb[0].mxu0 %v739
    %v1034 = vpop.f32.mrb[0].mxu0
    %v1035 = vadd.f32 %v763, %v1034
    %v1036 = vpop.f32.mrb[0].mxu0
    %v1037 = vadd.f32 %v767, %v1036
    %v1038 = vpop.f32.mrb[0].mxu0
    %v1039 = vadd.f32 %v763, %v1038
    %v1040 = vpop.f32.mrb[0].mxu0
    %v1041 = vadd.f32 %v767, %v1040
    %1042 = vdwg.mxu0
    %v1043 = vmax.f32 %v885, 0.0
    %v1044 = vmax.f32 %v889, 0.0
    %v1045 = vmax.f32 %v895, 0.0
    %v1046 = vmax.f32 %v899, 0.0
    %v1047 = vmax.f32 %v905, 0.0
    %v1048 = vmax.f32 %v909, 0.0
    %v1049 = vmax.f32 %v915, 0.0
    %v1050 = vmax.f32 %v919, 0.0
    %v1051 = vmax.f32 %v925, 0.0
    %v1052 = vmax.f32 %v929, 0.0
    %v1053 = vmax.f32 %v935, 0.0
    %v1054 = vmax.f32 %v939, 0.0
    %v1055 = vmax.f32 %v945, 0.0
    %v1056 = vmax.f32 %v949, 0.0
    %v1057 = vmax.f32 %v955, 0.0
    %v1058 = vmax.f32 %v959, 0.0
    %v1059 = vmax.f32 %v965, 0.0
    %v1060 = vmax.f32 %v969, 0.0
    %v1061 = vmax.f32 %v975, 0.0
    %v1062 = vmax.f32 %v979, 0.0
    %v1063 = vmax.f32 %v985, 0.0
    %v1064 = vmax.f32 %v989, 0.0
    %v1065 = vmax.f32 %v995, 0.0
    %v1066 = vmax.f32 %v999, 0.0
    %v1067 = vmax.f32 %v1005, 0.0
    %v1068 = vmax.f32 %v1009, 0.0
    %v1069 = vmax.f32 %v1015, 0.0
    %v1070 = vmax.f32 %v1019, 0.0
    %v1071 = vmax.f32 %v1025, 0.0
    %v1072 = vmax.f32 %v1029, 0.0
    %v1073 = vmax.f32 %v1035, 0.0
    %v1074 = vmax.f32 %v1039, 0.0
    %v1075 = vxor.u32 %v887, 2147483648
    %v1076 = vxor.u32 %v891, 2147483648
    %v1077 = vxor.u32 %v897, 2147483648
    %v1078 = vxor.u32 %v901, 2147483648
    %v1079 = vxor.u32 %v907, 2147483648
    %v1080 = vxor.u32 %v911, 2147483648
    %v1081 = vxor.u32 %v917, 2147483648
    %v1082 = vxor.u32 %v921, 2147483648
    %v1083 = vxor.u32 %v927, 2147483648
    %v1084 = vxor.u32 %v931, 2147483648
    %v1085 = vxor.u32 %v937, 2147483648
    %v1086 = vxor.u32 %v941, 2147483648
    %v1087 = vxor.u32 %v947, 2147483648
    %v1088 = vxor.u32 %v951, 2147483648
    %v1089 = vxor.u32 %v957, 2147483648
    %v1090 = vxor.u32 %v961, 2147483648
    %v1091 = vxor.u32 %v967, 2147483648
    %v1092 = vxor.u32 %v971, 2147483648
    %v1093 = vxor.u32 %v977, 2147483648
    %v1094 = vxor.u32 %v981, 2147483648
    %v1095 = vxor.u32 %v987, 2147483648
    %v1096 = vxor.u32 %v991, 2147483648
    %v1097 = vxor.u32 %v997, 2147483648
    %v1098 = vxor.u32 %v1001, 2147483648
    %v1099 = vxor.u32 %v1007, 2147483648
    %v1100 = vxor.u32 %v1011, 2147483648
    %v1101 = vxor.u32 %v1017, 2147483648
    %v1102 = vxor.u32 %v1021, 2147483648
    %v1103 = vxor.u32 %v1027, 2147483648
    %v1104 = vxor.u32 %v1031, 2147483648
    %v1105 = vxor.u32 %v1037, 2147483648
    %v1106 = vxor.u32 %v1041, 2147483648
    %v1107 = vmul.f32 %v1075, 1.442695
    %v1108 = vpow.pop %v1107
    %v1109 = vmul.f32 %v1076, 1.442695
    %v1110 = vpow.pop %v1109
    %v1111 = vmul.f32 %v1077, 1.442695
    %v1112 = vpow.pop %v1111
    %v1113 = vmul.f32 %v1078, 1.442695
    %v1114 = vpow.pop %v1113
    %v1115 = vmul.f32 %v1079, 1.442695
    %v1116 = vpow.pop %v1115
    %v1117 = vmul.f32 %v1080, 1.442695
    %v1118 = vpow.pop %v1117
    %v1119 = vmul.f32 %v1081, 1.442695
    %v1120 = vpow.pop %v1119
    %v1121 = vmul.f32 %v1082, 1.442695
    %v1122 = vpow.pop %v1121
    %v1123 = vmul.f32 %v1083, 1.442695
    %v1124 = vpow.pop %v1123
    %v1125 = vmul.f32 %v1084, 1.442695
    %v1126 = vpow.pop %v1125
    %v1127 = vmul.f32 %v1085, 1.442695
    %v1128 = vpow.pop %v1127
    %v1129 = vmul.f32 %v1086, 1.442695
    %v1130 = vpow.pop %v1129
    %v1131 = vmul.f32 %v1087, 1.442695
    %v1132 = vpow.pop %v1131
    %v1133 = vmul.f32 %v1088, 1.442695
    %v1134 = vpow.pop %v1133
    %v1135 = vmul.f32 %v1089, 1.442695
    %v1136 = vpow.pop %v1135
    %v1137 = vmul.f32 %v1090, 1.442695
    %v1138 = vpow.pop %v1137
    %v1139 = vmul.f32 %v1091, 1.442695
    %v1140 = vpow.pop %v1139
    %v1141 = vmul.f32 %v1092, 1.442695
    %v1142 = vpow.pop %v1141
    %v1143 = vmul.f32 %v1093, 1.442695
    %v1144 = vpow.pop %v1143
    %v1145 = vmul.f32 %v1094, 1.442695
    %v1146 = vpow.pop %v1145
    %v1147 = vmul.f32 %v1095, 1.442695
    %v1148 = vpow.pop %v1147
    %v1149 = vmul.f32 %v1096, 1.442695
    %v1150 = vpow.pop %v1149
    %v1151 = vmul.f32 %v1097, 1.442695
    %v1152 = vpow.pop %v1151
    %v1153 = vmul.f32 %v1098, 1.442695
    %v1154 = vpow.pop %v1153
    %v1155 = vmul.f32 %v1099, 1.442695
    %v1156 = vpow.pop %v1155
    %v1157 = vmul.f32 %v1100, 1.442695
    %v1158 = vpow.pop %v1157
    %v1159 = vmul.f32 %v1101, 1.442695
    %v1160 = vpow.pop %v1159
    %v1161 = vmul.f32 %v1102, 1.442695
    %v1162 = vpow.pop %v1161
    %v1163 = vmul.f32 %v1103, 1.442695
    %v1164 = vpow.pop %v1163
    %v1165 = vmul.f32 %v1104, 1.442695
    %v1166 = vpow.pop %v1165
    %v1167 = vmul.f32 %v1105, 1.442695
    %v1168 = vpow.pop %v1167
    %v1169 = vmul.f32 %v1106, 1.442695
    %v1170 = vpow.pop %v1169
    %v1171 = vadd.f32 %v1108, 1.0
    %v1172 = vadd.f32 %v1110, 1.0
    %v1173 = vadd.f32 %v1112, 1.0
    %v1174 = vadd.f32 %v1114, 1.0
    %v1175 = vadd.f32 %v1116, 1.0
    %v1176 = vadd.f32 %v1118, 1.0
    %v1177 = vadd.f32 %v1120, 1.0
    %v1178 = vadd.f32 %v1122, 1.0
    %v1179 = vadd.f32 %v1124, 1.0
    %v1180 = vadd.f32 %v1126, 1.0
    %v1181 = vadd.f32 %v1128, 1.0
    %v1182 = vadd.f32 %v1130, 1.0
    %v1183 = vadd.f32 %v1132, 1.0
    %v1184 = vadd.f32 %v1134, 1.0
    %v1185 = vadd.f32 %v1136, 1.0
    %v1186 = vadd.f32 %v1138, 1.0
    %v1187 = vadd.f32 %v1140, 1.0
    %v1188 = vadd.f32 %v1142, 1.0
    %v1189 = vadd.f32 %v1144, 1.0
    %v1190 = vadd.f32 %v1146, 1.0
    %v1191 = vadd.f32 %v1148, 1.0
    %v1192 = vadd.f32 %v1150, 1.0
    %v1193 = vadd.f32 %v1152, 1.0
    %v1194 = vadd.f32 %v1154, 1.0
    %v1195 = vadd.f32 %v1156, 1.0
    %v1196 = vadd.f32 %v1158, 1.0
    %v1197 = vadd.f32 %v1160, 1.0
    %v1198 = vadd.f32 %v1162, 1.0
    %v1199 = vadd.f32 %v1164, 1.0
    %v1200 = vadd.f32 %v1166, 1.0
    %v1201 = vadd.f32 %v1168, 1.0
    %v1202 = vadd.f32 %v1170, 1.0
    %v1203 = vrcp.pop %v1171
    %v1204 = vmul.f32 1.0, %v1203
    %v1205 = vrcp.pop %v1172
    %v1206 = vmul.f32 1.0, %v1205
    %v1207 = vrcp.pop %v1173
    %v1208 = vmul.f32 1.0, %v1207
    %v1209 = vrcp.pop %v1174
    %v1210 = vmul.f32 1.0, %v1209
    %v1211 = vrcp.pop %v1175
    %v1212 = vmul.f32 1.0, %v1211
    %v1213 = vrcp.pop %v1176
    %v1214 = vmul.f32 1.0, %v1213
    %v1215 = vrcp.pop %v1177
    %v1216 = vmul.f32 1.0, %v1215
    %v1217 = vrcp.pop %v1178
    %v1218 = vmul.f32 1.0, %v1217
    %v1219 = vrcp.pop %v1179
    %v1220 = vmul.f32 1.0, %v1219
    %v1221 = vrcp.pop %v1180
    %v1222 = vmul.f32 1.0, %v1221
    %v1223 = vrcp.pop %v1181
    %v1224 = vmul.f32 1.0, %v1223
    %v1225 = vrcp.pop %v1182
    %v1226 = vmul.f32 1.0, %v1225
    %v1227 = vrcp.pop %v1183
    %v1228 = vmul.f32 1.0, %v1227
    %v1229 = vrcp.pop %v1184
    %v1230 = vmul.f32 1.0, %v1229
    %v1231 = vrcp.pop %v1185
    %v1232 = vmul.f32 1.0, %v1231
    %v1233 = vrcp.pop %v1186
    %v1234 = vmul.f32 1.0, %v1233
    %v1235 = vrcp.pop %v1187
    %v1236 = vmul.f32 1.0, %v1235
    %v1237 = vrcp.pop %v1188
    %v1238 = vmul.f32 1.0, %v1237
    %v1239 = vrcp.pop %v1189
    %v1240 = vmul.f32 1.0, %v1239
    %v1241 = vrcp.pop %v1190
    %v1242 = vmul.f32 1.0, %v1241
    %v1243 = vrcp.pop %v1191
    %v1244 = vmul.f32 1.0, %v1243
    %v1245 = vrcp.pop %v1192
    %v1246 = vmul.f32 1.0, %v1245
    %v1247 = vrcp.pop %v1193
    %v1248 = vmul.f32 1.0, %v1247
    %v1249 = vrcp.pop %v1194
    %v1250 = vmul.f32 1.0, %v1249
    %v1251 = vrcp.pop %v1195
    %v1252 = vmul.f32 1.0, %v1251
    %v1253 = vrcp.pop %v1196
    %v1254 = vmul.f32 1.0, %v1253
    %v1255 = vrcp.pop %v1197
    %v1256 = vmul.f32 1.0, %v1255
    %v1257 = vrcp.pop %v1198
    %v1258 = vmul.f32 1.0, %v1257
    %v1259 = vrcp.pop %v1199
    %v1260 = vmul.f32 1.0, %v1259
    %v1261 = vrcp.pop %v1200
    %v1262 = vmul.f32 1.0, %v1261
    %v1263 = vrcp.pop %v1201
    %v1264 = vmul.f32 1.0, %v1263
    %v1265 = vrcp.pop %v1202
    %v1266 = vmul.f32 1.0, %v1265
    %v1267 = vsub.f32 %v692, %v1043
    %v1268 = vsub.f32 %v693, %v1044
    %v1269 = vsub.f32 %v694, %v1045
    %v1270 = vsub.f32 %v695, %v1046
    %v1271 = vsub.f32 %v696, %v1047
    %v1272 = vsub.f32 %v697, %v1048
    %v1273 = vsub.f32 %v698, %v1049
    %v1274 = vsub.f32 %v699, %v1050
    %v1275 = vsub.f32 %v700, %v1051
    %v1276 = vsub.f32 %v701, %v1052
    %v1277 = vsub.f32 %v702, %v1053
    %v1278 = vsub.f32 %v703, %v1054
    %v1279 = vsub.f32 %v704, %v1055
    %v1280 = vsub.f32 %v705, %v1056
    %v1281 = vsub.f32 %v706, %v1057
    %v1282 = vsub.f32 %v707, %v1058
    %v1283 = vsub.f32 %v708, %v1059
    %v1284 = vsub.f32 %v709, %v1060
    %v1285 = vsub.f32 %v710, %v1061
    %v1286 = vsub.f32 %v711, %v1062
    %v1287 = vsub.f32 %v712, %v1063
    %v1288 = vsub.f32 %v713, %v1064
    %v1289 = vsub.f32 %v714, %v1065
    %v1290 = vsub.f32 %v715, %v1066
    %v1291 = vsub.f32 %v716, %v1067
    %v1292 = vsub.f32 %v717, %v1068
    %v1293 = vsub.f32 %v718, %v1069
    %v1294 = vsub.f32 %v719, %v1070
    %v1295 = vsub.f32 %v720, %v1071
    %v1296 = vsub.f32 %v721, %v1072
    %v1297 = vsub.f32 %v722, %v1073
    %v1298 = vsub.f32 %v723, %v1074
    %v1299 = vmul.f32 %v1204, %v1267
    %v1300 = vmul.f32 %v1206, %v1268
    %v1301 = vmul.f32 %v1208, %v1269
    %v1302 = vmul.f32 %v1210, %v1270
    %v1303 = vmul.f32 %v1212, %v1271
    %v1304 = vmul.f32 %v1214, %v1272
    %v1305 = vmul.f32 %v1216, %v1273
    %v1306 = vmul.f32 %v1218, %v1274
    %v1307 = vmul.f32 %v1220, %v1275
    %v1308 = vmul.f32 %v1222, %v1276
    %v1309 = vmul.f32 %v1224, %v1277
    %v1310 = vmul.f32 %v1226, %v1278
    %v1311 = vmul.f32 %v1228, %v1279
    %v1312 = vmul.f32 %v1230, %v1280
    %v1313 = vmul.f32 %v1232, %v1281
    %v1314 = vmul.f32 %v1234, %v1282
    %v1315 = vmul.f32 %v1236, %v1283
    %v1316 = vmul.f32 %v1238, %v1284
    %v1317 = vmul.f32 %v1240, %v1285
    %v1318 = vmul.f32 %v1242, %v1286
    %v1319 = vmul.f32 %v1244, %v1287
    %v1320 = vmul.f32 %v1246, %v1288
    %v1321 = vmul.f32 %v1248, %v1289
    %v1322 = vmul.f32 %v1250, %v1290
    %v1323 = vmul.f32 %v1252, %v1291
    %v1324 = vmul.f32 %v1254, %v1292
    %v1325 = vmul.f32 %v1256, %v1293
    %v1326 = vmul.f32 %v1258, %v1294
    %v1327 = vmul.f32 %v1260, %v1295
    %v1328 = vmul.f32 %v1262, %v1296
    %v1329 = vmul.f32 %v1264, %v1297
    %v1330 = vmul.f32 %v1266, %v1298
    %v1331 = vadd.f32 %v1043, %v1299
    %v1332 = vadd.f32 %v1044, %v1300
    %v1333 = vadd.f32 %v1045, %v1301
    %v1334 = vadd.f32 %v1046, %v1302
    %v1335 = vadd.f32 %v1047, %v1303
    %v1336 = vadd.f32 %v1048, %v1304
    %v1337 = vadd.f32 %v1049, %v1305
    %v1338 = vadd.f32 %v1050, %v1306
    %v1339 = vadd.f32 %v1051, %v1307
    %v1340 = vadd.f32 %v1052, %v1308
    %v1341 = vadd.f32 %v1053, %v1309
    %v1342 = vadd.f32 %v1054, %v1310
    %v1343 = vadd.f32 %v1055, %v1311
    %v1344 = vadd.f32 %v1056, %v1312
    %v1345 = vadd.f32 %v1057, %v1313
    %v1346 = vadd.f32 %v1058, %v1314
    %v1347 = vadd.f32 %v1059, %v1315
    %v1348 = vadd.f32 %v1060, %v1316
    %v1349 = vadd.f32 %v1061, %v1317
    %v1350 = vadd.f32 %v1062, %v1318
    %v1351 = vadd.f32 %v1063, %v1319
    %v1352 = vadd.f32 %v1064, %v1320
    %v1353 = vadd.f32 %v1065, %v1321
    %v1354 = vadd.f32 %v1066, %v1322
    %v1355 = vadd.f32 %v1067, %v1323
    %v1356 = vadd.f32 %v1068, %v1324
    %v1357 = vadd.f32 %v1069, %v1325
    %v1358 = vadd.f32 %v1070, %v1326
    %v1359 = vadd.f32 %v1071, %v1327
    %v1360 = vadd.f32 %v1072, %v1328
    %v1361 = vadd.f32 %v1073, %v1329
    %v1362 = vadd.f32 %v1074, %v1330
    %v1363 = vpack.c.bf16 %v1332, %v1331
    %v1364 = vpack.c.bf16 %v1334, %v1333
    %v1365 = vpack.c.bf16 %v1336, %v1335
    %v1366 = vpack.c.bf16 %v1338, %v1337
    %v1367 = vpack.c.bf16 %v1340, %v1339
    %v1368 = vpack.c.bf16 %v1342, %v1341
    %v1369 = vpack.c.bf16 %v1344, %v1343
    %v1370 = vpack.c.bf16 %v1346, %v1345
    %v1371 = vpack.c.bf16 %v1348, %v1347
    %v1372 = vpack.c.bf16 %v1350, %v1349
    %v1373 = vpack.c.bf16 %v1352, %v1351
    %v1374 = vpack.c.bf16 %v1354, %v1353
    %v1375 = vpack.c.bf16 %v1356, %v1355
    %v1376 = vpack.c.bf16 %v1358, %v1357
    %v1377 = vpack.c.bf16 %v1360, %v1359
    %v1378 = vpack.c.bf16 %v1362, %v1361
    %s1379 = scalar_lea.vmem [#allocation5], 256
    %v1380 = vld [vmem:[%s1379] sm:$0xff]
    %v1381 = vld [vmem:[%s1379 + $0x8] sm:$0xff]
    %v1382 = vld [vmem:[%s1379 + $0x10] sm:$0xff]
    %v1383 = vld [vmem:[%s1379 + $0x18] sm:$0xff]
    %v1384 = vld [vmem:[%s1379 + $0x20] sm:$0xff]
    %v1385 = vld [vmem:[%s1379 + $0x28] sm:$0xff]
    %v1386 = vld [vmem:[%s1379 + $0x30] sm:$0xff]
    %v1387 = vld [vmem:[%s1379 + $0x38] sm:$0xff]
    %v1388 = vld [vmem:[%s1379 + $0x40] sm:$0xff]
    %v1389 = vld [vmem:[%s1379 + $0x48] sm:$0xff]
    %v1390 = vld [vmem:[%s1379 + $0x50] sm:$0xff]
    %v1391 = vld [vmem:[%s1379 + $0x58] sm:$0xff]
    %v1392 = vld [vmem:[%s1379 + $0x60] sm:$0xff]
    %v1393 = vld [vmem:[%s1379 + $0x68] sm:$0xff]
    %v1394 = vld [vmem:[%s1379 + $0x70] sm:$0xff]
    %v1395 = vld [vmem:[%s1379 + $0x78] sm:$0xff]
    %s1396 = scalar_lea.vmem [#allocation7], 2
    %v1397 = vld [vmem:[%s1396] ss:$4 sm:$0x3]
    %v1399 = vlaneseq
    %v1400 = vshrl.u32 %v1399, 7
    %v1401 = vsub.s32 0, %v1400
    %v1402 = vrot.slane %v1397, %v1401
    %v1403 = vlaneseq
    %v1404 = vshrl.u32 %v1403, 7
    %v1405 = vsub.s32 1, %v1404
    %v1406 = vrot.slane %v1397, %v1405
    %v1425 = vunpack.c.l.b16 %v1380
    %v1426 = vunpack.c.h.b16 %v1380
    %v1427 = vunpack.c.l.b16 %v1381
    %v1428 = vunpack.c.h.b16 %v1381
    %v1429 = vunpack.c.l.b16 %v1382
    %v1430 = vunpack.c.h.b16 %v1382
    %v1431 = vunpack.c.l.b16 %v1383
    %v1432 = vunpack.c.h.b16 %v1383
    %v1433 = vunpack.c.l.b16 %v1384
    %v1434 = vunpack.c.h.b16 %v1384
    %v1435 = vunpack.c.l.b16 %v1385
    %v1436 = vunpack.c.h.b16 %v1385
    %v1437 = vunpack.c.l.b16 %v1386
    %v1438 = vunpack.c.h.b16 %v1386
    %v1439 = vunpack.c.l.b16 %v1387
    %v1440 = vunpack.c.h.b16 %v1387
    %v1441 = vunpack.c.l.b16 %v1388
    %v1442 = vunpack.c.h.b16 %v1388
    %v1443 = vunpack.c.l.b16 %v1389
    %v1444 = vunpack.c.h.b16 %v1389
    %v1445 = vunpack.c.l.b16 %v1390
    %v1446 = vunpack.c.h.b16 %v1390
    %v1447 = vunpack.c.l.b16 %v1391
    %v1448 = vunpack.c.h.b16 %v1391
    %v1449 = vunpack.c.l.b16 %v1392
    %v1450 = vunpack.c.h.b16 %v1392
    %v1451 = vunpack.c.l.b16 %v1393
    %v1452 = vunpack.c.h.b16 %v1393
    %v1453 = vunpack.c.l.b16 %v1394
    %v1454 = vunpack.c.h.b16 %v1394
    %v1455 = vunpack.c.l.b16 %v1395
    %v1456 = vunpack.c.h.b16 %v1395
    %v1457 = vpack.c.b16 %v1427, %v1425
    %v1458 = vpack.c.b16 %v1428, %v1426
    %v1459 = vpack.c.b16 %v1431, %v1429
    %v1460 = vpack.c.b16 %v1432, %v1430
    %v1461 = vpack.c.b16 %v1435, %v1433
    %v1462 = vpack.c.b16 %v1436, %v1434
    %v1463 = vpack.c.b16 %v1439, %v1437
    %v1464 = vpack.c.b16 %v1440, %v1438
    %v1465 = vpack.c.b16 %v1443, %v1441
    %v1466 = vpack.c.b16 %v1444, %v1442
    %v1467 = vpack.c.b16 %v1447, %v1445
    %v1468 = vpack.c.b16 %v1448, %v1446
    %v1469 = vpack.c.b16 %v1451, %v1449
    %v1470 = vpack.c.b16 %v1452, %v1450
    %v1471 = vpack.c.b16 %v1455, %v1453
    %v1472 = vpack.c.b16 %v1456, %v1454
    %1489 = vmatprep.subr.bf16.mxu0 %v1458
    %1490 = vmatpush1.bf16.msra.mxu0 %v1457
    %1491 = vmatprep.subr.bf16.mxu0 %v1460
    %1492 = vmatpush1.bf16.msra.mxu0 %v1459
    %1493 = vmatprep.subr.bf16.mxu0 %v1462
    %1494 = vmatpush1.bf16.msra.mxu0 %v1461
    %1495 = vmatprep.subr.bf16.mxu0 %v1464
    %1496 = vmatpush1.bf16.msra.mxu0 %v1463
    %1497 = vmatprep.subr.bf16.mxu0 %v1466
    %1498 = vmatpush1.bf16.msra.mxu0 %v1465
    %1499 = vmatprep.subr.bf16.mxu0 %v1468
    %1500 = vmatpush1.bf16.msra.mxu0 %v1467
    %1501 = vmatprep.subr.bf16.mxu0 %v1470
    %1502 = vmatpush1.bf16.msra.mxu0 %v1469
    %1503 = vmatprep.subr.bf16.mxu0 %v1472
    %1504 = vmatpush1.bf16.msra.mxu0 %v1471
    %1505 = vmatprep.subr.bf16.mxu0 0
    %1506 = vmatpush1.bf16.msra.mxu0 0
    %1507 = vmatprep.subr.bf16.mxu0 0
    %1508 = vmatpush1.bf16.msra.mxu0 0
    %1509 = vmatprep.subr.bf16.mxu0 0
    %1510 = vmatpush1.bf16.msra.mxu0 0
    %1511 = vmatprep.subr.bf16.mxu0 0
    %1512 = vmatpush1.bf16.msra.mxu0 0
    %1513 = vmatprep.subr.bf16.mxu0 0
    %1514 = vmatpush1.bf16.msra.mxu0 0
    %1515 = vmatprep.subr.bf16.mxu0 0
    %1516 = vmatpush1.bf16.msra.mxu0 0
    %1517 = vmatprep.subr.bf16.mxu0 0
    %1518 = vmatpush1.bf16.msra.mxu0 0
    %1519 = vmatprep.subr.bf16.mxu0 0
    %1520 = vmatpush1.bf16.msra.mxu0 0
    %1521 = vmatprep.mubr.bf16.mxu0 0
    %1522 = vmatmul.mubr.bf16.gmra.mrb[0].mxu0 %v1363
    %v1523 = vpop.f32.mrb[0].mxu0
    %v1524 = vadd.f32 %v1402, %v1523
    %v1525 = vpop.f32.mrb[0].mxu0
    %v1526 = vadd.f32 %v1406, %v1525
    %v1527 = vpop.f32.mrb[0].mxu0
    %v1528 = vadd.f32 %v1402, %v1527
    %v1529 = vpop.f32.mrb[0].mxu0
    %v1530 = vadd.f32 %v1406, %v1529
    %1531 = vmatprep.mubr.bf16.mxu0 0
    %1532 = vmatmul.mubr.bf16.gmra.mrb[0].mxu0 %v1364
    %v1533 = vpop.f32.mrb[0].mxu0
    %v1534 = vadd.f32 %v1402, %v1533
    %v1535 = vpop.f32.mrb[0].mxu0
    %v1536 = vadd.f32 %v1406, %v1535
    %v1537 = vpop.f32.mrb[0].mxu0
    %v1538 = vadd.f32 %v1402, %v1537
    %v1539 = vpop.f32.mrb[0].mxu0
    %v1540 = vadd.f32 %v1406, %v1539
    %1541 = vmatprep.mubr.bf16.mxu0 0
    %1542 = vmatmul.mubr.bf16.gmra.mrb[0].mxu0 %v1365
    %v1543 = vpop.f32.mrb[0].mxu0
    %v1544 = vadd.f32 %v1402, %v1543
    %v1545 = vpop.f32.mrb[0].mxu0
    %v1546 = vadd.f32 %v1406, %v1545
    %v1547 = vpop.f32.mrb[0].mxu0
    %v1548 = vadd.f32 %v1402, %v1547
    %v1549 = vpop.f32.mrb[0].mxu0
    %v1550 = vadd.f32 %v1406, %v1549
    %1551 = vmatprep.mubr.bf16.mxu0 0
    %1552 = vmatmul.mubr.bf16.gmra.mrb[0].mxu0 %v1366
    %v1553 = vpop.f32.mrb[0].mxu0
    %v1554 = vadd.f32 %v1402, %v1553
    %v1555 = vpop.f32.mrb[0].mxu0
    %v1556 = vadd.f32 %v1406, %v1555
    %v1557 = vpop.f32.mrb[0].mxu0
    %v1558 = vadd.f32 %v1402, %v1557
    %v1559 = vpop.f32.mrb[0].mxu0
    %v1560 = vadd.f32 %v1406, %v1559
    %1561 = vmatprep.mubr.bf16.mxu0 0
    %1562 = vmatmul.mubr.bf16.gmra.mrb[0].mxu0 %v1367
    %v1563 = vpop.f32.mrb[0].mxu0
    %v1564 = vadd.f32 %v1402, %v1563
    %v1565 = vpop.f32.mrb[0].mxu0
    %v1566 = vadd.f32 %v1406, %v1565
    %v1567 = vpop.f32.mrb[0].mxu0
    %v1568 = vadd.f32 %v1402, %v1567
    %v1569 = vpop.f32.mrb[0].mxu0
    %v1570 = vadd.f32 %v1406, %v1569
    %1571 = vmatprep.mubr.bf16.mxu0 0
    %1572 = vmatmul.mubr.bf16.gmra.mrb[0].mxu0 %v1368
    %v1573 = vpop.f32.mrb[0].mxu0
    %v1574 = vadd.f32 %v1402, %v1573
    %v1575 = vpop.f32.mrb[0].mxu0
    %v1576 = vadd.f32 %v1406, %v1575
    %v1577 = vpop.f32.mrb[0].mxu0
    %v1578 = vadd.f32 %v1402, %v1577
    %v1579 = vpop.f32.mrb[0].mxu0
    %v1580 = vadd.f32 %v1406, %v1579
    %1581 = vmatprep.mubr.bf16.mxu0 0
    %1582 = vmatmul.mubr.bf16.gmra.mrb[0].mxu0 %v1369
    %v1583 = vpop.f32.mrb[0].mxu0
    %v1584 = vadd.f32 %v1402, %v1583
    %v1585 = vpop.f32.mrb[0].mxu0
    %v1586 = vadd.f32 %v1406, %v1585
    %v1587 = vpop.f32.mrb[0].mxu0
    %v1588 = vadd.f32 %v1402, %v1587
    %v1589 = vpop.f32.mrb[0].mxu0
    %v1590 = vadd.f32 %v1406, %v1589
    %1591 = vmatprep.mubr.bf16.mxu0 0
    %1592 = vmatmul.mubr.bf16.gmra.mrb[0].mxu0 %v1370
    %v1593 = vpop.f32.mrb[0].mxu0
    %v1594 = vadd.f32 %v1402, %v1593
    %v1595 = vpop.f32.mrb[0].mxu0
    %v1596 = vadd.f32 %v1406, %v1595
    %v1597 = vpop.f32.mrb[0].mxu0
    %v1598 = vadd.f32 %v1402, %v1597
    %v1599 = vpop.f32.mrb[0].mxu0
    %v1600 = vadd.f32 %v1406, %v1599
    %1601 = vmatprep.mubr.bf16.mxu0 0
    %1602 = vmatmul.mubr.bf16.gmra.mrb[0].mxu0 %v1371
    %v1603 = vpop.f32.mrb[0].mxu0
    %v1604 = vadd.f32 %v1402, %v1603
    %v1605 = vpop.f32.mrb[0].mxu0
    %v1606 = vadd.f32 %v1406, %v1605
    %v1607 = vpop.f32.mrb[0].mxu0
    %v1608 = vadd.f32 %v1402, %v1607
    %v1609 = vpop.f32.mrb[0].mxu0
    %v1610 = vadd.f32 %v1406, %v1609
    %1611 = vmatprep.mubr.bf16.mxu0 0
    %1612 = vmatmul.mubr.bf16.gmra.mrb[0].mxu0 %v1372
    %v1613 = vpop.f32.mrb[0].mxu0
    %v1614 = vadd.f32 %v1402, %v1613
    %v1615 = vpop.f32.mrb[0].mxu0
    %v1616 = vadd.f32 %v1406, %v1615
    %v1617 = vpop.f32.mrb[0].mxu0
    %v1618 = vadd.f32 %v1402, %v1617
    %v1619 = vpop.f32.mrb[0].mxu0
    %v1620 = vadd.f32 %v1406, %v1619
    %1621 = vmatprep.mubr.bf16.mxu0 0
    %1622 = vmatmul.mubr.bf16.gmra.mrb[0].mxu0 %v1373
    %v1623 = vpop.f32.mrb[0].mxu0
    %v1624 = vadd.f32 %v1402, %v1623
    %v1625 = vpop.f32.mrb[0].mxu0
    %v1626 = vadd.f32 %v1406, %v1625
    %v1627 = vpop.f32.mrb[0].mxu0
    %v1628 = vadd.f32 %v1402, %v1627
    %v1629 = vpop.f32.mrb[0].mxu0
    %v1630 = vadd.f32 %v1406, %v1629
    %1631 = vmatprep.mubr.bf16.mxu0 0
    %1632 = vmatmul.mubr.bf16.gmra.mrb[0].mxu0 %v1374
    %v1633 = vpop.f32.mrb[0].mxu0
    %v1634 = vadd.f32 %v1402, %v1633
    %v1635 = vpop.f32.mrb[0].mxu0
    %v1636 = vadd.f32 %v1406, %v1635
    %v1637 = vpop.f32.mrb[0].mxu0
    %v1638 = vadd.f32 %v1402, %v1637
    %v1639 = vpop.f32.mrb[0].mxu0
    %v1640 = vadd.f32 %v1406, %v1639
    %1641 = vmatprep.mubr.bf16.mxu0 0
    %1642 = vmatmul.mubr.bf16.gmra.mrb[0].mxu0 %v1375
    %v1643 = vpop.f32.mrb[0].mxu0
    %v1644 = vadd.f32 %v1402, %v1643
    %v1645 = vpop.f32.mrb[0].mxu0
    %v1646 = vadd.f32 %v1406, %v1645
    %v1647 = vpop.f32.mrb[0].mxu0
    %v1648 = vadd.f32 %v1402, %v1647
    %v1649 = vpop.f32.mrb[0].mxu0
    %v1650 = vadd.f32 %v1406, %v1649
    %1651 = vmatprep.mubr.bf16.mxu0 0
    %1652 = vmatmul.mubr.bf16.gmra.mrb[0].mxu0 %v1376
    %v1653 = vpop.f32.mrb[0].mxu0
    %v1654 = vadd.f32 %v1402, %v1653
    %v1655 = vpop.f32.mrb[0].mxu0
    %v1656 = vadd.f32 %v1406, %v1655
    %v1657 = vpop.f32.mrb[0].mxu0
    %v1658 = vadd.f32 %v1402, %v1657
    %v1659 = vpop.f32.mrb[0].mxu0
    %v1660 = vadd.f32 %v1406, %v1659
    %1661 = vmatprep.mubr.bf16.mxu0 0
    %1662 = vmatmul.mubr.bf16.gmra.mrb[0].mxu0 %v1377
    %v1663 = vpop.f32.mrb[0].mxu0
    %v1664 = vadd.f32 %v1402, %v1663
    %v1665 = vpop.f32.mrb[0].mxu0
    %v1666 = vadd.f32 %v1406, %v1665
    %v1667 = vpop.f32.mrb[0].mxu0
    %v1668 = vadd.f32 %v1402, %v1667
    %v1669 = vpop.f32.mrb[0].mxu0
    %v1670 = vadd.f32 %v1406, %v1669
    %1671 = vmatprep.mubr.bf16.mxu0 0
    %1672 = vmatmul.mubr.bf16.gmra.mrb[0].mxu0 %v1378
    %v1673 = vpop.f32.mrb[0].mxu0
    %v1674 = vadd.f32 %v1402, %v1673
    %v1675 = vpop.f32.mrb[0].mxu0
    %v1676 = vadd.f32 %v1406, %v1675
    %v1677 = vpop.f32.mrb[0].mxu0
    %v1678 = vadd.f32 %v1402, %v1677
    %v1679 = vpop.f32.mrb[0].mxu0
    %v1680 = vadd.f32 %v1406, %v1679
    %1681 = vdwg.mxu0
    %v1682 = vmax.f32 %v1524, 0.0
    %v1683 = vmax.f32 %v1528, 0.0
    %v1684 = vmax.f32 %v1534, 0.0
    %v1685 = vmax.f32 %v1538, 0.0
    %v1686 = vmax.f32 %v1544, 0.0
    %v1687 = vmax.f32 %v1548, 0.0
    %v1688 = vmax.f32 %v1554, 0.0
    %v1689 = vmax.f32 %v1558, 0.0
    %v1690 = vmax.f32 %v1564, 0.0
    %v1691 = vmax.f32 %v1568, 0.0
    %v1692 = vmax.f32 %v1574, 0.0
    %v1693 = vmax.f32 %v1578, 0.0
    %v1694 = vmax.f32 %v1584, 0.0
    %v1695 = vmax.f32 %v1588, 0.0
    %v1696 = vmax.f32 %v1594, 0.0
    %v1697 = vmax.f32 %v1598, 0.0
    %v1698 = vmax.f32 %v1604, 0.0
    %v1699 = vmax.f32 %v1608, 0.0
    %v1700 = vmax.f32 %v1614, 0.0
    %v1701 = vmax.f32 %v1618, 0.0
    %v1702 = vmax.f32 %v1624, 0.0
    %v1703 = vmax.f32 %v1628, 0.0
    %v1704 = vmax.f32 %v1634, 0.0
    %v1705 = vmax.f32 %v1638, 0.0
    %v1706 = vmax.f32 %v1644, 0.0
    %v1707 = vmax.f32 %v1648, 0.0
    %v1708 = vmax.f32 %v1654, 0.0
    %v1709 = vmax.f32 %v1658, 0.0
    %v1710 = vmax.f32 %v1664, 0.0
    %v1711 = vmax.f32 %v1668, 0.0
    %v1712 = vmax.f32 %v1674, 0.0
    %v1713 = vmax.f32 %v1678, 0.0
    %v1714 = vxor.u32 %v1526, 2147483648
    %v1715 = vxor.u32 %v1530, 2147483648
    %v1716 = vxor.u32 %v1536, 2147483648
    %v1717 = vxor.u32 %v1540, 2147483648
    %v1718 = vxor.u32 %v1546, 2147483648
    %v1719 = vxor.u32 %v1550, 2147483648
    %v1720 = vxor.u32 %v1556, 2147483648
    %v1721 = vxor.u32 %v1560, 2147483648
    %v1722 = vxor.u32 %v1566, 2147483648
    %v1723 = vxor.u32 %v1570, 2147483648
    %v1724 = vxor.u32 %v1576, 2147483648
    %v1725 = vxor.u32 %v1580, 2147483648
    %v1726 = vxor.u32 %v1586, 2147483648
    %v1727 = vxor.u32 %v1590, 2147483648
    %v1728 = vxor.u32 %v1596, 2147483648
    %v1729 = vxor.u32 %v1600, 2147483648
    %v1730 = vxor.u32 %v1606, 2147483648
    %v1731 = vxor.u32 %v1610, 2147483648
    %v1732 = vxor.u32 %v1616, 2147483648
    %v1733 = vxor.u32 %v1620, 2147483648
    %v1734 = vxor.u32 %v1626, 2147483648
    %v1735 = vxor.u32 %v1630, 2147483648
    %v1736 = vxor.u32 %v1636, 2147483648
    %v1737 = vxor.u32 %v1640, 2147483648
    %v1738 = vxor.u32 %v1646, 2147483648
    %v1739 = vxor.u32 %v1650, 2147483648
    %v1740 = vxor.u32 %v1656, 2147483648
    %v1741 = vxor.u32 %v1660, 2147483648
    %v1742 = vxor.u32 %v1666, 2147483648
    %v1743 = vxor.u32 %v1670, 2147483648
    %v1744 = vxor.u32 %v1676, 2147483648
    %v1745 = vxor.u32 %v1680, 2147483648
    %v1746 = vmul.f32 %v1714, 1.442695
    %v1747 = vpow.pop %v1746
    %v1748 = vmul.f32 %v1715, 1.442695
    %v1749 = vpow.pop %v1748
    %v1750 = vmul.f32 %v1716, 1.442695
    %v1751 = vpow.pop %v1750
    %v1752 = vmul.f32 %v1717, 1.442695
    %v1753 = vpow.pop %v1752
    %v1754 = vmul.f32 %v1718, 1.442695
    %v1755 = vpow.pop %v1754
    %v1756 = vmul.f32 %v1719, 1.442695
    %v1757 = vpow.pop %v1756
    %v1758 = vmul.f32 %v1720, 1.442695
    %v1759 = vpow.pop %v1758
    %v1760 = vmul.f32 %v1721, 1.442695
    %v1761 = vpow.pop %v1760
    %v1762 = vmul.f32 %v1722, 1.442695
    %v1763 = vpow.pop %v1762
    %v1764 = vmul.f32 %v1723, 1.442695
    %v1765 = vpow.pop %v1764
    %v1766 = vmul.f32 %v1724, 1.442695
    %v1767 = vpow.pop %v1766
    %v1768 = vmul.f32 %v1725, 1.442695
    %v1769 = vpow.pop %v1768
    %v1770 = vmul.f32 %v1726, 1.442695
    %v1771 = vpow.pop %v1770
    %v1772 = vmul.f32 %v1727, 1.442695
    %v1773 = vpow.pop %v1772
    %v1774 = vmul.f32 %v1728, 1.442695
    %v1775 = vpow.pop %v1774
    %v1776 = vmul.f32 %v1729, 1.442695
    %v1777 = vpow.pop %v1776
    %v1778 = vmul.f32 %v1730, 1.442695
    %v1779 = vpow.pop %v1778
    %v1780 = vmul.f32 %v1731, 1.442695
    %v1781 = vpow.pop %v1780
    %v1782 = vmul.f32 %v1732, 1.442695
    %v1783 = vpow.pop %v1782
    %v1784 = vmul.f32 %v1733, 1.442695
    %v1785 = vpow.pop %v1784
    %v1786 = vmul.f32 %v1734, 1.442695
    %v1787 = vpow.pop %v1786
    %v1788 = vmul.f32 %v1735, 1.442695
    %v1789 = vpow.pop %v1788
    %v1790 = vmul.f32 %v1736, 1.442695
    %v1791 = vpow.pop %v1790
    %v1792 = vmul.f32 %v1737, 1.442695
    %v1793 = vpow.pop %v1792
    %v1794 = vmul.f32 %v1738, 1.442695
    %v1795 = vpow.pop %v1794
    %v1796 = vmul.f32 %v1739, 1.442695
    %v1797 = vpow.pop %v1796
    %v1798 = vmul.f32 %v1740, 1.442695
    %v1799 = vpow.pop %v1798
    %v1800 = vmul.f32 %v1741, 1.442695
    %v1801 = vpow.pop %v1800
    %v1802 = vmul.f32 %v1742, 1.442695
    %v1803 = vpow.pop %v1802
    %v1804 = vmul.f32 %v1743, 1.442695
    %v1805 = vpow.pop %v1804
    %v1806 = vmul.f32 %v1744, 1.442695
    %v1807 = vpow.pop %v1806
    %v1808 = vmul.f32 %v1745, 1.442695
    %v1809 = vpow.pop %v1808
    %v1810 = vadd.f32 %v1747, 1.0
    %v1811 = vadd.f32 %v1749, 1.0
    %v1812 = vadd.f32 %v1751, 1.0
    %v1813 = vadd.f32 %v1753, 1.0
    %v1814 = vadd.f32 %v1755, 1.0
    %v1815 = vadd.f32 %v1757, 1.0
    %v1816 = vadd.f32 %v1759, 1.0
    %v1817 = vadd.f32 %v1761, 1.0
    %v1818 = vadd.f32 %v1763, 1.0
    %v1819 = vadd.f32 %v1765, 1.0
    %v1820 = vadd.f32 %v1767, 1.0
    %v1821 = vadd.f32 %v1769, 1.0
    %v1822 = vadd.f32 %v1771, 1.0
    %v1823 = vadd.f32 %v1773, 1.0
    %v1824 = vadd.f32 %v1775, 1.0
    %v1825 = vadd.f32 %v1777, 1.0
    %v1826 = vadd.f32 %v1779, 1.0
    %v1827 = vadd.f32 %v1781, 1.0
    %v1828 = vadd.f32 %v1783, 1.0
    %v1829 = vadd.f32 %v1785, 1.0
    %v1830 = vadd.f32 %v1787, 1.0
    %v1831 = vadd.f32 %v1789, 1.0
    %v1832 = vadd.f32 %v1791, 1.0
    %v1833 = vadd.f32 %v1793, 1.0
    %v1834 = vadd.f32 %v1795, 1.0
    %v1835 = vadd.f32 %v1797, 1.0
    %v1836 = vadd.f32 %v1799, 1.0
    %v1837 = vadd.f32 %v1801, 1.0
    %v1838 = vadd.f32 %v1803, 1.0
    %v1839 = vadd.f32 %v1805, 1.0
    %v1840 = vadd.f32 %v1807, 1.0
    %v1841 = vadd.f32 %v1809, 1.0
    %v1842 = vrcp.pop %v1810
    %v1843 = vmul.f32 1.0, %v1842
    %v1844 = vrcp.pop %v1811
    %v1845 = vmul.f32 1.0, %v1844
    %v1846 = vrcp.pop %v1812
    %v1847 = vmul.f32 1.0, %v1846
    %v1848 = vrcp.pop %v1813
    %v1849 = vmul.f32 1.0, %v1848
    %v1850 = vrcp.pop %v1814
    %v1851 = vmul.f32 1.0, %v1850
    %v1852 = vrcp.pop %v1815
    %v1853 = vmul.f32 1.0, %v1852
    %v1854 = vrcp.pop %v1816
    %v1855 = vmul.f32 1.0, %v1854
    %v1856 = vrcp.pop %v1817
    %v1857 = vmul.f32 1.0, %v1856
    %v1858 = vrcp.pop %v1818
    %v1859 = vmul.f32 1.0, %v1858
    %v1860 = vrcp.pop %v1819
    %v1861 = vmul.f32 1.0, %v1860
    %v1862 = vrcp.pop %v1820
    %v1863 = vmul.f32 1.0, %v1862
    %v1864 = vrcp.pop %v1821
    %v1865 = vmul.f32 1.0, %v1864
    %v1866 = vrcp.pop %v1822
    %v1867 = vmul.f32 1.0, %v1866
    %v1868 = vrcp.pop %v1823
    %v1869 = vmul.f32 1.0, %v1868
    %v1870 = vrcp.pop %v1824
    %v1871 = vmul.f32 1.0, %v1870
    %v1872 = vrcp.pop %v1825
    %v1873 = vmul.f32 1.0, %v1872
    %v1874 = vrcp.pop %v1826
    %v1875 = vmul.f32 1.0, %v1874
    %v1876 = vrcp.pop %v1827
    %v1877 = vmul.f32 1.0, %v1876
    %v1878 = vrcp.pop %v1828
    %v1879 = vmul.f32 1.0, %v1878
    %v1880 = vrcp.pop %v1829
    %v1881 = vmul.f32 1.0, %v1880
    %v1882 = vrcp.pop %v1830
    %v1883 = vmul.f32 1.0, %v1882
    %v1884 = vrcp.pop %v1831
    %v1885 = vmul.f32 1.0, %v1884
    %v1886 = vrcp.pop %v1832
    %v1887 = vmul.f32 1.0, %v1886
    %v1888 = vrcp.pop %v1833
    %v1889 = vmul.f32 1.0, %v1888
    %v1890 = vrcp.pop %v1834
    %v1891 = vmul.f32 1.0, %v1890
    %v1892 = vrcp.pop %v1835
    %v1893 = vmul.f32 1.0, %v1892
    %v1894 = vrcp.pop %v1836
    %v1895 = vmul.f32 1.0, %v1894
    %v1896 = vrcp.pop %v1837
    %v1897 = vmul.f32 1.0, %v1896
    %v1898 = vrcp.pop %v1838
    %v1899 = vmul.f32 1.0, %v1898
    %v1900 = vrcp.pop %v1839
    %v1901 = vmul.f32 1.0, %v1900
    %v1902 = vrcp.pop %v1840
    %v1903 = vmul.f32 1.0, %v1902
    %v1904 = vrcp.pop %v1841
    %v1905 = vmul.f32 1.0, %v1904
    %v1906 = vsub.f32 %v1331, %v1682
    %v1907 = vsub.f32 %v1332, %v1683
    %v1908 = vsub.f32 %v1333, %v1684
    %v1909 = vsub.f32 %v1334, %v1685
    %v1910 = vsub.f32 %v1335, %v1686
    %v1911 = vsub.f32 %v1336, %v1687
    %v1912 = vsub.f32 %v1337, %v1688
    %v1913 = vsub.f32 %v1338, %v1689
    %v1914 = vsub.f32 %v1339, %v1690
    %v1915 = vsub.f32 %v1340, %v1691
    %v1916 = vsub.f32 %v1341, %v1692
    %v1917 = vsub.f32 %v1342, %v1693
    %v1918 = vsub.f32 %v1343, %v1694
    %v1919 = vsub.f32 %v1344, %v1695
    %v1920 = vsub.f32 %v1345, %v1696
    %v1921 = vsub.f32 %v1346, %v1697
    %v1922 = vsub.f32 %v1347, %v1698
    %v1923 = vsub.f32 %v1348, %v1699
    %v1924 = vsub.f32 %v1349, %v1700
    %v1925 = vsub.f32 %v1350, %v1701
    %v1926 = vsub.f32 %v1351, %v1702
    %v1927 = vsub.f32 %v1352, %v1703
    %v1928 = vsub.f32 %v1353, %v1704
    %v1929 = vsub.f32 %v1354, %v1705
    %v1930 = vsub.f32 %v1355, %v1706
    %v1931 = vsub.f32 %v1356, %v1707
    %v1932 = vsub.f32 %v1357, %v1708
    %v1933 = vsub.f32 %v1358, %v1709
    %v1934 = vsub.f32 %v1359, %v1710
    %v1935 = vsub.f32 %v1360, %v1711
    %v1936 = vsub.f32 %v1361, %v1712
    %v1937 = vsub.f32 %v1362, %v1713
    %v1938 = vmul.f32 %v1843, %v1906
    %v1939 = vmul.f32 %v1845, %v1907
    %v1940 = vmul.f32 %v1847, %v1908
    %v1941 = vmul.f32 %v1849, %v1909
    %v1942 = vmul.f32 %v1851, %v1910
    %v1943 = vmul.f32 %v1853, %v1911
    %v1944 = vmul.f32 %v1855, %v1912
    %v1945 = vmul.f32 %v1857, %v1913
    %v1946 = vmul.f32 %v1859, %v1914
    %v1947 = vmul.f32 %v1861, %v1915
    %v1948 = vmul.f32 %v1863, %v1916
    %v1949 = vmul.f32 %v1865, %v1917
    %v1950 = vmul.f32 %v1867, %v1918
    %v1951 = vmul.f32 %v1869, %v1919
    %v1952 = vmul.f32 %v1871, %v1920
    %v1953 = vmul.f32 %v1873, %v1921
    %v1954 = vmul.f32 %v1875, %v1922
    %v1955 = vmul.f32 %v1877, %v1923
    %v1956 = vmul.f32 %v1879, %v1924
    %v1957 = vmul.f32 %v1881, %v1925
    %v1958 = vmul.f32 %v1883, %v1926
    %v1959 = vmul.f32 %v1885, %v1927
    %v1960 = vmul.f32 %v1887, %v1928
    %v1961 = vmul.f32 %v1889, %v1929
    %v1962 = vmul.f32 %v1891, %v1930
    %v1963 = vmul.f32 %v1893, %v1931
    %v1964 = vmul.f32 %v1895, %v1932
    %v1965 = vmul.f32 %v1897, %v1933
    %v1966 = vmul.f32 %v1899, %v1934
    %v1967 = vmul.f32 %v1901, %v1935
    %v1968 = vmul.f32 %v1903, %v1936
    %v1969 = vmul.f32 %v1905, %v1937
    %v1970 = vadd.f32 %v1682, %v1938
    %v1971 = vadd.f32 %v1683, %v1939
    %v1972 = vadd.f32 %v1684, %v1940
    %v1973 = vadd.f32 %v1685, %v1941
    %v1974 = vadd.f32 %v1686, %v1942
    %v1975 = vadd.f32 %v1687, %v1943
    %v1976 = vadd.f32 %v1688, %v1944
    %v1977 = vadd.f32 %v1689, %v1945
    %v1978 = vadd.f32 %v1690, %v1946
    %v1979 = vadd.f32 %v1691, %v1947
    %v1980 = vadd.f32 %v1692, %v1948
    %v1981 = vadd.f32 %v1693, %v1949
    %v1982 = vadd.f32 %v1694, %v1950
    %v1983 = vadd.f32 %v1695, %v1951
    %v1984 = vadd.f32 %v1696, %v1952
    %v1985 = vadd.f32 %v1697, %v1953
    %v1986 = vadd.f32 %v1698, %v1954
    %v1987 = vadd.f32 %v1699, %v1955
    %v1988 = vadd.f32 %v1700, %v1956
    %v1989 = vadd.f32 %v1701, %v1957
    %v1990 = vadd.f32 %v1702, %v1958
    %v1991 = vadd.f32 %v1703, %v1959
    %v1992 = vadd.f32 %v1704, %v1960
    %v1993 = vadd.f32 %v1705, %v1961
    %v1994 = vadd.f32 %v1706, %v1962
    %v1995 = vadd.f32 %v1707, %v1963
    %v1996 = vadd.f32 %v1708, %v1964
    %v1997 = vadd.f32 %v1709, %v1965
    %v1998 = vadd.f32 %v1710, %v1966
    %v1999 = vadd.f32 %v1711, %v1967
    %v2000 = vadd.f32 %v1712, %v1968
    %v2001 = vadd.f32 %v1713, %v1969
    %2002 = vst [vmem:[#allocation8] sm:$0xff] %v1970
    %2003 = vst [vmem:[#allocation8 + $0x8] sm:$0xff] %v1971
    %2004 = vst [vmem:[#allocation8 + $0x10] sm:$0xff] %v1972
    %2005 = vst [vmem:[#allocation8 + $0x18] sm:$0xff] %v1973
    %2006 = vst [vmem:[#allocation8 + $0x20] sm:$0xff] %v1974
    %2007 = vst [vmem:[#allocation8 + $0x28] sm:$0xff] %v1975
    %2008 = vst [vmem:[#allocation8 + $0x30] sm:$0xff] %v1976
    %2009 = vst [vmem:[#allocation8 + $0x38] sm:$0xff] %v1977
    %2010 = vst [vmem:[#allocation8 + $0x40] sm:$0xff] %v1978
    %2011 = vst [vmem:[#allocation8 + $0x48] sm:$0xff] %v1979
    %2012 = vst [vmem:[#allocation8 + $0x50] sm:$0xff] %v1980
    %2013 = vst [vmem:[#allocation8 + $0x58] sm:$0xff] %v1981
    %2014 = vst [vmem:[#allocation8 + $0x60] sm:$0xff] %v1982
    %2015 = vst [vmem:[#allocation8 + $0x68] sm:$0xff] %v1983
    %2016 = vst [vmem:[#allocation8 + $0x70] sm:$0xff] %v1984
    %2017 = vst [vmem:[#allocation8 + $0x78] sm:$0xff] %v1985
    %2018 = vst [vmem:[#allocation8 + $0x80] sm:$0xff] %v1986
    %2019 = vst [vmem:[#allocation8 + $0x88] sm:$0xff] %v1987
    %2020 = vst [vmem:[#allocation8 + $0x90] sm:$0xff] %v1988
    %2021 = vst [vmem:[#allocation8 + $0x98] sm:$0xff] %v1989
    %2022 = vst [vmem:[#allocation8 + $0xa0] sm:$0xff] %v1990
    %2023 = vst [vmem:[#allocation8 + $0xa8] sm:$0xff] %v1991
    %2024 = vst [vmem:[#allocation8 + $0xb0] sm:$0xff] %v1992
    %2025 = vst [vmem:[#allocation8 + $0xb8] sm:$0xff] %v1993
    %2026 = vst [vmem:[#allocation8 + $0xc0] sm:$0xff] %v1994
    %2027 = vst [vmem:[#allocation8 + $0xc8] sm:$0xff] %v1995
    %2028 = vst [vmem:[#allocation8 + $0xd0] sm:$0xff] %v1996
    %2029 = vst [vmem:[#allocation8 + $0xd8] sm:$0xff] %v1997
    %2030 = vst [vmem:[#allocation8 + $0xe0] sm:$0xff] %v1998
    %2031 = vst [vmem:[#allocation8 + $0xe8] sm:$0xff] %v1999
    %2032 = vst [vmem:[#allocation8 + $0xf0] sm:$0xff] %v2000
    %2033 = vst [vmem:[#allocation8 + $0xf8] sm:$0xff] %v2001
    // Predicated region
    $region26: #{tpu_custom_call.1} parent=1 // pred_check
      _
    $region27: #{tpu_custom_call.1} parent=1 // pred_check_branch
      %2035 = sbr.rel (0) target = $region29
    $region28: #{tpu_custom_call.1} parent=1 // pred_region
      %s2037 = ssub.s32 4096, 4096
      %2038 = vsyncadd [#allocation4], %s2037
      %s2039 = sshll.u32 [#allocation8], 4
      %s2040 = int_to_ptr.vmem [resolvable:$true] %s2039
      %2045 = dma.vmem_to_hbm [thread:$0]  %s2040, 4096, %s3, [#allocation4], 128, 128, 8
    $region29: #{tpu_custom_call.1} parent=1 // pred_fallthru
      _
    // Predicated region
    $region30: #{tpu_custom_call.1} parent=1 // pred_check
      _
    $region31: #{tpu_custom_call.1} parent=1 // pred_check_branch
      %2047 = sbr.rel (0) target = $region33
    $region32: #{tpu_custom_call.1} parent=1 // pred_region
      %2048 = dma.done [#allocation4], 4096
    $region33: #{tpu_custom_call.1} parent=1 // pred_fallthru
      _
    %2049 = vsyncpa [#allocation3], 1
    %2050 = vsyncpa [#allocation6], 1
    %2051 = vsyncpa [#allocation4], 1

</llo_original>
